<compile_context>
chip_gen: v5e
topology: v5e:2x2
jax: 0.10.0
libtpu: 0.0.40
codegen_flags: <defaults>
</compile_context>

<pallas_src>
import functools
import math

import numpy as np
import jax
import jax.numpy as jnp
from jax import lax
from jax.experimental import pallas as pl
from jax.experimental.pallas import tpu as pltpu

_SQRT_HALF = 0.7071067811865476
_LANE = 128


def _round_up(x, m):
    return (x + m - 1) // m * m


def _gelu_exact(x):
    # matches torch.nn.functional.gelu default ('none' / erf formulation)
    return 0.5 * x * (1.0 + lax.erf(x * _SQRT_HALF))


# --------------------------- fused ConvBlock kernel ---------------------------

def _conv_block_kernel(xl_ref, xc_ref, xr_ref, w1_ref, b1_ref, w2_ref, b2_ref, *rest,
                       TL, H, L, K, dilation, pad, has_proj, compute_dtype):
    """One (batch, L-tile) grid step of a full ConvBlock.

    xl/xc/xr : (1, H, Cin) / (1, TL, Cin) / (1, H, Cin) left-halo / centre / right-halo
    w1       : (K*Cin,  Cout) folded conv1 weight       b1: (1, Cout)
    w2       : (K*Cout, Cout) folded conv2 weight       b2: (1, Cout)
    [pw, pb] : (Cin, Cout), (1, Cout) optional 1x1 projector
    o        : (1, TL, Cout)
    """
    if has_proj:
        pw_ref, pb_ref, o_ref = rest
    else:
        (o_ref,) = rest

    t = pl.program_id(1)
    d = dilation
    rf = (K - 1) * d + 1
    M1 = TL + rf - 1          # rows of conv1 output needed (centre tile + conv2 halo)
    off0 = H - 2 * pad        # window row feeding h[0] tap 0 (>= 0 since H >= 2*pad)

    # ---- assemble the (H + TL + H, Cin) input window, zero outside [0, L) ----
    xw = jnp.concatenate([xl_ref[0], xc_ref[0], xr_ref[0]], axis=0)
    g = t * TL - H + lax.broadcasted_iota(jnp.int32, (TL + 2 * H, 1), 0)
    xw = jnp.where((g >= 0) & (g < L), xw, 0.0)

    res_in = xw[H:H + TL, :]                 # pre-GELU centre tile (residual input)

    # ---- conv1: gelu(x), K taps folded into a single MXU matmul ----
    xg = _gelu_exact(xw).astype(compute_dtype)
    x1 = jnp.concatenate(
        [xg[off0 + k * d: off0 + k * d + M1, :] for k in range(K)], axis=1)
    h = jnp.dot(x1, w1_ref[...], preferred_element_type=jnp.float32) + b1_ref[...]

    # SamePadConv zero-pads conv1's length-L output before conv2 -> zero the halo
    # rows of h that fall outside the true sequence (gelu(0) == 0).
    gh = t * TL - pad + lax.broadcasted_iota(jnp.int32, (M1, 1), 0)
    h = jnp.where((gh >= 0) & (gh < L), h, 0.0)

    # ---- conv2: gelu(h), folded K-tap matmul ----
    hg = _gelu_exact(h).astype(compute_dtype)
    x2 = jnp.concatenate([hg[k * d: k * d + TL, :] for k in range(K)], axis=1)
    out = jnp.dot(x2, w2_ref[...], preferred_element_type=jnp.float32) + b2_ref[...]

    # ---- residual path (optional fused 1x1 projector) ----
    if has_proj:
        res = jnp.dot(res_in.astype(compute_dtype), pw_ref[...],
                      preferred_element_type=jnp.float32) + pb_ref[...]
    else:
        res = res_in

    o_ref[0] = (out + res).astype(o_ref.dtype)


def _conv_block(x_ext, p, *, L, TL, H, compute_dtype):
    """Apply one fused ConvBlock: (B, L_round, Cin_p) -> (B, L_round, Cout_p)."""
    B, L_round, c_in_p = x_ext.shape
    c_out_p = p["c_out_p"]
    K, d = p["K"], p["dilation"]
    pad = ((K - 1) * d + 1) // 2
    has_proj = p["pw"] is not None

    T = L_round // TL          # number of L tiles
    R = TL // H                # halo blocks per tile (H divides TL)
    last_h_blk = T * R - 1

    kernel = functools.partial(
        _conv_block_kernel, TL=TL, H=H, L=L, K=K, dilation=d, pad=pad,
        has_proj=has_proj, compute_dtype=compute_dtype)

    full = lambda shape: pl.BlockSpec(shape, lambda b, t: (0,) * len(shape))
    in_specs = [
        # left halo / centre / right halo views of the same input array.  The
        # clamped halo indices may load wrong rows at the sequence ends, but those
        # rows are zero-masked in-kernel by their global position.
        pl.BlockSpec((1, H, c_in_p), lambda b, t: (b, jnp.maximum(t * R - 1, 0), 0)),
        pl.BlockSpec((1, TL, c_in_p), lambda b, t: (b, t, 0)),
        pl.BlockSpec((1, H, c_in_p),
                     lambda b, t: (b, jnp.minimum((t + 1) * R, last_h_blk), 0)),
        full((K * c_in_p, c_out_p)), full((1, c_out_p)),      # conv1 weight / bias
        full((K * c_out_p, c_out_p)), full((1, c_out_p)),     # conv2 weight / bias
    ]
    operands = [x_ext, x_ext, x_ext, p["wf1"], p["b1"], p["wf2"], p["b2"]]
    if has_proj:
        in_specs += [full((c_in_p, c_out_p)), full((1, c_out_p))]
        operands += [p["pw"], p["pb"]]

    return pl.pallas_call(
        kernel,
        out_shape=jax.ShapeDtypeStruct((B, L_round, c_out_p), x_ext.dtype),
        grid=(B, T),
        in_specs=in_specs,
        out_specs=pl.BlockSpec((1, TL, c_out_p), lambda b, t: (b, t, 0)),
        compiler_params=pltpu.CompilerParams(
            dimension_semantics=("parallel", "parallel"),
            vmem_limit_bytes=48 * 1024 * 1024),
    )(*operands)


# ---------------- parameter construction (deterministic, PyTorch-like shapes) ----------------

def init_encoder_params(key, in_channels, channels, kernel_size):
    """Weights stored as (K, C_in, C_out) (transposed Conv1d weight), bias (C_out,)."""
    params = []
    n = len(channels)
    for i, c_out in enumerate(channels):
        c_in = channels[i - 1] if i > 0 else in_channels
        final = (i == n - 1)
        keys = jax.random.split(jax.random.fold_in(key, i), 6)

        def uinit(k, shape, fan_in):
            bound = 1.0 / math.sqrt(fan_in)
            return jax.random.uniform(k, shape, jnp.float32, -bound, bound)

        blk = dict(
            dilation=2 ** i,
            w1=uinit(keys[0], (kernel_size, c_in, c_out), c_in * kernel_size),
            b1=uinit(keys[1], (c_out,), c_in * kernel_size),
            w2=uinit(keys[2], (kernel_size, c_out, c_out), c_out * kernel_size),
            b2=uinit(keys[3], (c_out,), c_out * kernel_size),
        )
        if c_in != c_out or final:
            blk["pw"] = uinit(keys[4], (1, c_in, c_out), c_in)  # 1x1 projector
            blk["pb"] = uinit(keys[5], (c_out,), c_in)
        else:
            blk["pw"] = None
            blk["pb"] = None
        params.append(blk)
    return params


def _prepare_params(params, compute_dtype):
    """Zero-pad channels to lane width (128), fold K taps into the weight's leading
    dim, and cast matmul operands to compute_dtype (biases stay fp32)."""
    prepared = []
    for blk in params:
        K, c_in, c_out = blk["w1"].shape
        cip, cop = _round_up(c_in, _LANE), _round_up(c_out, _LANE)
        w1 = jnp.zeros((K, cip, cop), compute_dtype).at[:, :c_in, :c_out].set(
            blk["w1"].astype(compute_dtype))
        w2 = jnp.zeros((K, cop, cop), compute_dtype).at[:, :c_out, :c_out].set(
            blk["w2"].astype(compute_dtype))
        p = dict(
            dilation=blk["dilation"], K=K, c_out=c_out, c_in_p=cip, c_out_p=cop,
            wf1=w1.reshape(K * cip, cop),
            b1=jnp.zeros((1, cop), jnp.float32).at[0, :c_out].set(blk["b1"]),
            wf2=w2.reshape(K * cop, cop),
            b2=jnp.zeros((1, cop), jnp.float32).at[0, :c_out].set(blk["b2"]),
        )
        if blk["pw"] is not None:
            p["pw"] = jnp.zeros((cip, cop), compute_dtype).at[:c_in, :c_out].set(
                blk["pw"][0].astype(compute_dtype))
            p["pb"] = jnp.zeros((1, cop), jnp.float32).at[0, :c_out].set(blk["pb"])
        else:
            p["pw"] = p["pb"] = None
        prepared.append(p)
    return prepared


# ---------------- forward pass (glue in plain JAX, compute in Pallas) ----------------

def dilated_conv_encoder_forward(x_ncl, params, *, l_tile=512,
                                 compute_dtype=jnp.float32):
    """PyTorch layout (N, C, L) in / out.  Internally NLC with 128-padded channels."""
    B, C0, L = x_ncl.shape
    pblocks = _prepare_params(params, compute_dtype)

    # Halo requirement (multiple of 8 sublanes) across all blocks; a single tile
    # size for the whole stack keeps one padded length for all intermediates.
    H = 8
    for p in pblocks:
        pad = ((p["K"] - 1) * p["dilation"] + 1) // 2
        H = max(H, _round_up(2 * pad, 8))
    TL = max(H, _round_up(min(l_tile, _round_up(L, 8)), H))
    L_round = _round_up(L, TL)

    c0_p = _round_up(C0, _LANE)
    x = jnp.transpose(x_ncl, (0, 2, 1))                           # NCL -> NLC
    x = jnp.pad(x, ((0, 0), (0, L_round - L), (0, c0_p - C0)))    # single boundary pad

    for p in pblocks:
        x = _conv_block(x, p, L=L, TL=TL, H=H, compute_dtype=compute_dtype)

    out = x[:, :L, :pblocks[-1]["c_out"]]
    return jnp.transpose(out, (0, 2, 1))                          # NLC -> NCL


# ---------------- pure-JAX reference (for correctness check) ----------------

def _ref_samepad_conv(x_ncl, w_kio, b, dilation):
    K = w_kio.shape[0]
    rf = (K - 1) * dilation + 1
    pad = rf // 2
    w_oik = jnp.transpose(w_kio, (2, 1, 0))  # (C_out, C_in, K)
    out = lax.conv_general_dilated(
        x_ncl, w_oik, window_strides=(1,), padding=[(pad, pad)],
        rhs_dilation=(dilation,), dimension_numbers=("NCH", "OIH", "NCH"),
        precision=lax.Precision.HIGHEST)
    out = out + b[None, :, None]
    if rf % 2 == 0:
        out = out[:, :, :-1]
    return out


def ref_forward(x_ncl, params):
    x = x_ncl
    for blk in params:
        d = blk["dilation"]
        if blk["pw"] is not None:
            res = _ref_samepad_conv(x, blk["pw"], blk["pb"], 1)
        else:
            res = x
        h = jax.nn.gelu(x, approximate=False)
        h = _ref_samepad_conv(h, blk["w1"], blk["b1"], d)
        h = jax.nn.gelu(h, approximate=False)
        h = _ref_samepad_conv(h, blk["w2"], blk["b2"], d)
        x = h + res
    return x


if __name__ == "__main__":
    key = jax.random.PRNGKey(0)
    B, C_in, L = 2, 8, 50
    channels = [16, 16, 32]       # dilations 1, 2, 4; middle block has no projector
    kernel_size = 3

    kx, kp = jax.random.split(key)
    x = jax.random.normal(kx, (B, C_in, L), jnp.float32)   # PyTorch NCL layout
    params = init_encoder_params(kp, C_in, channels, kernel_size)

    ref = ref_forward(x, params)

    # fp32 MXU path, small L-tile -> exercises multi-tile halos + boundary masking.
    out = jax.block_until_ready(dilated_conv_encoder_forward(x, params, l_tile=16))
    np.testing.assert_allclose(np.asarray(out), np.asarray(ref), rtol=2e-3, atol=2e-3)
    assert out.shape == (B, channels[-1], L)

    # bf16 MXU inputs with fp32 accumulation, single L-tile (looser tolerance).
    out_bf = jax.block_until_ready(
        dilated_conv_encoder_forward(x, params, compute_dtype=jnp.bfloat16))
    np.testing.assert_allclose(np.asarray(out_bf), np.asarray(ref),
                               rtol=1.5e-1, atol=1.5e-1)
    assert out_bf.shape == (B, channels[-1], L)

    print("KERNEL_OK")
</pallas_src>

<mosaic_0001>
module attributes {stable_mosaic.version = 11 : i64} {
  func.func @_conv_block_kernel(%arg0: i32, %arg1: i32, %arg2: memref<1x8x128xf32, #tpu.memory_space<vmem>>, %arg3: memref<1x16x128xf32, #tpu.memory_space<vmem>>, %arg4: memref<1x8x128xf32, #tpu.memory_space<vmem>>, %arg5: memref<384x128xf32, #tpu.memory_space<vmem>>, %arg6: memref<1x128xf32, #tpu.memory_space<vmem>>, %arg7: memref<384x128xf32, #tpu.memory_space<vmem>>, %arg8: memref<1x128xf32, #tpu.memory_space<vmem>>, %arg9: memref<128x128xf32, #tpu.memory_space<vmem>>, %arg10: memref<1x128xf32, #tpu.memory_space<vmem>>, %arg11: memref<1x16x128xf32, #tpu.memory_space<vmem>>) attributes {dimension_semantics = [#tpu.dimension_semantics<parallel>, #tpu.dimension_semantics<parallel>], iteration_bounds = array<i64: 2, 4>, scalar_prefetch = 0 : i64, scratch_operands = 0 : i64, tpu.core_type = #tpu.core_type<tc>, window_params = [{transform_indices = @transform_0, window_bounds = array<i64: 1, 8, 128>}, {transform_indices = @transform_1, window_bounds = array<i64: 1, 16, 128>}, {transform_indices = @transform_2, window_bounds = array<i64: 1, 8, 128>}, {pipeline_mode = #tpu.pipeline_mode<synchronous>, transform_indices = @transform_3, window_bounds = array<i64: 384, 128>}, {pipeline_mode = #tpu.pipeline_mode<synchronous>, transform_indices = @transform_4, window_bounds = array<i64: 1, 128>}, {pipeline_mode = #tpu.pipeline_mode<synchronous>, transform_indices = @transform_5, window_bounds = array<i64: 384, 128>}, {pipeline_mode = #tpu.pipeline_mode<synchronous>, transform_indices = @transform_6, window_bounds = array<i64: 1, 128>}, {pipeline_mode = #tpu.pipeline_mode<synchronous>, transform_indices = @transform_7, window_bounds = array<i64: 128, 128>}, {pipeline_mode = #tpu.pipeline_mode<synchronous>, transform_indices = @transform_8, window_bounds = array<i64: 1, 128>}, {transform_indices = @transform_9, window_bounds = array<i64: 1, 16, 128>}]} {
    %c0 = arith.constant 0 : index
    %c0_0 = arith.constant 0 : index
    %c0_1 = arith.constant 0 : index
    %0 = vector.load %arg2[%c0, %c0_0, %c0_1] : memref<1x8x128xf32, #tpu.memory_space<vmem>>, vector<1x8x128xf32>
    %1 = vector.shape_cast %0 : vector<1x8x128xf32> to vector<8x128xf32>
    %c0_2 = arith.constant 0 : index
    %c0_3 = arith.constant 0 : index
    %c0_4 = arith.constant 0 : index
    %2 = vector.load %arg3[%c0_2, %c0_3, %c0_4] : memref<1x16x128xf32, #tpu.memory_space<vmem>>, vector<1x16x128xf32>
    %3 = vector.shape_cast %2 : vector<1x16x128xf32> to vector<16x128xf32>
    %c0_5 = arith.constant 0 : index
    %c0_6 = arith.constant 0 : index
    %c0_7 = arith.constant 0 : index
    %4 = vector.load %arg4[%c0_5, %c0_6, %c0_7] : memref<1x8x128xf32, #tpu.memory_space<vmem>>, vector<1x8x128xf32>
    %5 = vector.shape_cast %4 : vector<1x8x128xf32> to vector<8x128xf32>
    %6 = tpu.concatenate %1, %3, %5 in 0 : vector<8x128xf32>, vector<16x128xf32>, vector<8x128xf32> -> vector<32x128xf32>
    %c16_i32 = arith.constant 16 : i32
    %7 = arith.muli %arg1, %c16_i32 : i32
    %c8_i32 = arith.constant 8 : i32
    %8 = arith.subi %7, %c8_i32 : i32
    %9 = tpu.iota {dimensions = array<i32: 0>} : vector<32x1xi32>
    %10 = vector.broadcast %8 : i32 to vector<32x1xi32>
    %11 = arith.addi %10, %9 : vector<32x1xi32>
    %c0_i32 = arith.constant 0 : i32
    %12 = vector.broadcast %c0_i32 : i32 to vector<32x1xi32>
    %13 = arith.cmpi sge, %11, %12 : vector<32x1xi32>
    %c50_i32 = arith.constant 50 : i32
    %14 = vector.broadcast %c50_i32 : i32 to vector<32x1xi32>
    %15 = arith.cmpi slt, %11, %14 : vector<32x1xi32>
    %16 = arith.andi %13, %15 : vector<32x1xi1>
    %cst = arith.constant 0.000000e+00 : f32
    %17 = vector.shape_cast %16 : vector<32x1xi1> to vector<32x1xi1>
    %18 = vector.broadcast %17 : vector<32x1xi1> to vector<32x128xi1>
    %19 = vector.broadcast %cst : f32 to vector<32x128xf32>
    %20 = arith.select %18, %6, %19 : vector<32x128xi1>, vector<32x128xf32>
    %21 = vector.extract_strided_slice %20 {offsets = [8, 0], sizes = [16, 128], strides = [1, 1]} : vector<32x128xf32> to vector<16x128xf32>
    %cst_8 = arith.constant 5.000000e-01 : f32
    %22 = vector.broadcast %cst_8 : f32 to vector<32x128xf32>
    %23 = arith.mulf %22, %20 : vector<32x128xf32>
    %cst_9 = arith.constant 0.707106769 : f32
    %24 = vector.broadcast %cst_9 : f32 to vector<32x128xf32>
    %25 = arith.mulf %20, %24 : vector<32x128xf32>
    %26 = math.erf %25 : vector<32x128xf32>
    %cst_10 = arith.constant 1.000000e+00 : f32
    %27 = vector.broadcast %cst_10 : f32 to vector<32x128xf32>
    %28 = arith.addf %27, %26 : vector<32x128xf32>
    %29 = arith.mulf %23, %28 : vector<32x128xf32>
    %30 = vector.extract_strided_slice %29 {offsets = [6, 0], sizes = [18, 128], strides = [1, 1]} : vector<32x128xf32> to vector<18x128xf32>
    %31 = vector.extract_strided_slice %29 {offsets = [7, 0], sizes = [18, 128], strides = [1, 1]} : vector<32x128xf32> to vector<18x128xf32>
    %32 = vector.extract_strided_slice %29 {offsets = [8, 0], sizes = [18, 128], strides = [1, 1]} : vector<32x128xf32> to vector<18x128xf32>
    %33 = tpu.concatenate %30, %31, %32 in 1 : vector<18x128xf32>, vector<18x128xf32>, vector<18x128xf32> -> vector<18x384xf32>
    %c0_11 = arith.constant 0 : index
    %c0_12 = arith.constant 0 : index
    %34 = vector.load %arg5[%c0_11, %c0_12] : memref<384x128xf32, #tpu.memory_space<vmem>>, vector<384x128xf32>
    %cst_13 = arith.constant dense<0.000000e+00> : vector<18x128xf32>
    %35 = tpu.matmul %33, %34, %cst_13 {dimension_numbers = #tpu.dot_dimension_numbers<[1], [0], [0], [1], [0, 0, 1, 1], [], []>} : vector<18x384xf32>, vector<384x128xf32>, vector<18x128xf32> -> vector<18x128xf32>
    %c0_14 = arith.constant 0 : index
    %c0_15 = arith.constant 0 : index
    %36 = vector.load %arg6[%c0_14, %c0_15] : memref<1x128xf32, #tpu.memory_space<vmem>>, vector<1x128xf32>
    %37 = vector.broadcast %36 : vector<1x128xf32> to vector<18x128xf32>
    %38 = arith.addf %35, %37 : vector<18x128xf32>
    %c16_i32_16 = arith.constant 16 : i32
    %39 = arith.muli %arg1, %c16_i32_16 : i32
    %c1_i32 = arith.constant 1 : i32
    %40 = arith.subi %39, %c1_i32 : i32
    %41 = tpu.iota {dimensions = array<i32: 0>} : vector<18x1xi32>
    %42 = vector.broadcast %40 : i32 to vector<18x1xi32>
    %43 = arith.addi %42, %41 : vector<18x1xi32>
    %c0_i32_17 = arith.constant 0 : i32
    %44 = vector.broadcast %c0_i32_17 : i32 to vector<18x1xi32>
    %45 = arith.cmpi sge, %43, %44 : vector<18x1xi32>
    %c50_i32_18 = arith.constant 50 : i32
    %46 = vector.broadcast %c50_i32_18 : i32 to vector<18x1xi32>
    %47 = arith.cmpi slt, %43, %46 : vector<18x1xi32>
    %48 = arith.andi %45, %47 : vector<18x1xi1>
    %cst_19 = arith.constant 0.000000e+00 : f32
    %49 = vector.shape_cast %48 : vector<18x1xi1> to vector<18x1xi1>
    %50 = vector.broadcast %49 : vector<18x1xi1> to vector<18x128xi1>
    %51 = vector.broadcast %cst_19 : f32 to vector<18x128xf32>
    %52 = arith.select %50, %38, %51 : vector<18x128xi1>, vector<18x128xf32>
    %cst_20 = arith.constant 5.000000e-01 : f32
    %53 = vector.broadcast %cst_20 : f32 to vector<18x128xf32>
    %54 = arith.mulf %53, %52 : vector<18x128xf32>
    %cst_21 = arith.constant 0.707106769 : f32
    %55 = vector.broadcast %cst_21 : f32 to vector<18x128xf32>
    %56 = arith.mulf %52, %55 : vector<18x128xf32>
    %57 = math.erf %56 : vector<18x128xf32>
    %cst_22 = arith.constant 1.000000e+00 : f32
    %58 = vector.broadcast %cst_22 : f32 to vector<18x128xf32>
    %59 = arith.addf %58, %57 : vector<18x128xf32>
    %60 = arith.mulf %54, %59 : vector<18x128xf32>
    %61 = vector.extract_strided_slice %60 {offsets = [0, 0], sizes = [16, 128], strides = [1, 1]} : vector<18x128xf32> to vector<16x128xf32>
    %62 = vector.extract_strided_slice %60 {offsets = [1, 0], sizes = [16, 128], strides = [1, 1]} : vector<18x128xf32> to vector<16x128xf32>
    %63 = vector.extract_strided_slice %60 {offsets = [2, 0], sizes = [16, 128], strides = [1, 1]} : vector<18x128xf32> to vector<16x128xf32>
    %64 = tpu.concatenate %61, %62, %63 in 1 : vector<16x128xf32>, vector<16x128xf32>, vector<16x128xf32> -> vector<16x384xf32>
    %c0_23 = arith.constant 0 : index
    %c0_24 = arith.constant 0 : index
    %65 = vector.load %arg7[%c0_23, %c0_24] : memref<384x128xf32, #tpu.memory_space<vmem>>, vector<384x128xf32>
    %cst_25 = arith.constant dense<0.000000e+00> : vector<16x128xf32>
    %66 = tpu.matmul %64, %65, %cst_25 {dimension_numbers = #tpu.dot_dimension_numbers<[1], [0], [0], [1], [0, 0, 1, 1], [], []>} : vector<16x384xf32>, vector<384x128xf32>, vector<16x128xf32> -> vector<16x128xf32>
    %c0_26 = arith.constant 0 : index
    %c0_27 = arith.constant 0 : index
    %67 = vector.load %arg8[%c0_26, %c0_27] : memref<1x128xf32, #tpu.memory_space<vmem>>, vector<1x128xf32>
    %68 = vector.broadcast %67 : vector<1x128xf32> to vector<16x128xf32>
    %69 = arith.addf %66, %68 : vector<16x128xf32>
    %c0_28 = arith.constant 0 : index
    %c0_29 = arith.constant 0 : index
    %70 = vector.load %arg9[%c0_28, %c0_29] : memref<128x128xf32, #tpu.memory_space<vmem>>, vector<128x128xf32>
    %cst_30 = arith.constant dense<0.000000e+00> : vector<16x128xf32>
    %71 = tpu.matmul %21, %70, %cst_30 {dimension_numbers = #tpu.dot_dimension_numbers<[1], [0], [0], [1], [0, 0, 1, 1], [], []>} : vector<16x128xf32>, vector<128x128xf32>, vector<16x128xf32> -> vector<16x128xf32>
    %c0_31 = arith.constant 0 : index
    %c0_32 = arith.constant 0 : index
    %72 = vector.load %arg10[%c0_31, %c0_32] : memref<1x128xf32, #tpu.memory_space<vmem>>, vector<1x128xf32>
    %73 = vector.broadcast %72 : vector<1x128xf32> to vector<16x128xf32>
    %74 = arith.addf %71, %73 : vector<16x128xf32>
    %75 = arith.addf %69, %74 : vector<16x128xf32>
    %c0_33 = arith.constant 0 : index
    %c0_34 = arith.constant 0 : index
    %c0_35 = arith.constant 0 : index
    %76 = vector.load %arg11[%c0_33, %c0_34, %c0_35] : memref<1x16x128xf32, #tpu.memory_space<vmem>>, vector<1x16x128xf32>
    %77 = vector.shape_cast %76 : vector<1x16x128xf32> to vector<16x128xf32>
    %78 = vector.shape_cast %75 : vector<16x128xf32> to vector<1x16x128xf32>
    tpu.vector_store %arg11[%c0_33, %c0_34, %c0_35], %78 {strides = array<i32>} : memref<1x16x128xf32, #tpu.memory_space<vmem>>, vector<1x16x128xf32>,
    return
  }
  func.func @transform_0(%arg0: i32, %arg1: i32) -> (i32, i32, i32) {
    %c2_i32 = arith.constant 2 : i32
    %0 = arith.muli %arg1, %c2_i32 : i32
    %c1_i32 = arith.constant 1 : i32
    %1 = arith.subi %0, %c1_i32 : i32
    %c0_i32 = arith.constant 0 : i32
    %2 = arith.maxsi %1, %c0_i32 : i32
    %c0_i32_0 = arith.constant 0 : i32
    %c0_i32_1 = arith.constant 0 : i32
    return %arg0, %2, %c0_i32_0 : i32, i32, i32
  }
  func.func @transform_1(%arg0: i32, %arg1: i32) -> (i32, i32, i32) {
    %c0_i32 = arith.constant 0 : i32
    %c0_i32_0 = arith.constant 0 : i32
    return %arg0, %arg1, %c0_i32 : i32, i32, i32
  }
  func.func @transform_2(%arg0: i32, %arg1: i32) -> (i32, i32, i32) {
    %c1_i32 = arith.constant 1 : i32
    %0 = arith.addi %arg1, %c1_i32 : i32
    %c2_i32 = arith.constant 2 : i32
    %1 = arith.muli %0, %c2_i32 : i32
    %c7_i32 = arith.constant 7 : i32
    %2 = arith.minsi %1, %c7_i32 : i32
    %c0_i32 = arith.constant 0 : i32
    %c0_i32_0 = arith.constant 0 : i32
    return %arg0, %2, %c0_i32 : i32, i32, i32
  }
  func.func @transform_3(%arg0: i32, %arg1: i32) -> (i32, i32) {
    %c0_i32 = arith.constant 0 : i32
    %c0_i32_0 = arith.constant 0 : i32
    %c0_i32_1 = arith.constant 0 : i32
    return %c0_i32, %c0_i32_0 : i32, i32
  }
  func.func @transform_4(%arg0: i32, %arg1: i32) -> (i32, i32) {
    %c0_i32 = arith.constant 0 : i32
    %c0_i32_0 = arith.constant 0 : i32
    %c0_i32_1 = arith.constant 0 : i32
    return %c0_i32, %c0_i32_0 : i32, i32
  }
  func.func @transform_5(%arg0: i32, %arg1: i32) -> (i32, i32) {
    %c0_i32 = arith.constant 0 : i32
    %c0_i32_0 = arith.constant 0 : i32
    %c0_i32_1 = arith.constant 0 : i32
    return %c0_i32, %c0_i32_0 : i32, i32
  }
  func.func @transform_6(%arg0: i32, %arg1: i32) -> (i32, i32) {
    %c0_i32 = arith.constant 0 : i32
    %c0_i32_0 = arith.constant 0 : i32
    %c0_i32_1 = arith.constant 0 : i32
    return %c0_i32, %c0_i32_0 : i32, i32
  }
  func.func @transform_7(%arg0: i32, %arg1: i32) -> (i32, i32) {
    %c0_i32 = arith.constant 0 : i32
    %c0_i32_0 = arith.constant 0 : i32
    %c0_i32_1 = arith.constant 0 : i32
    return %c0_i32, %c0_i32_0 : i32, i32
  }
  func.func @transform_8(%arg0: i32, %arg1: i32) -> (i32, i32) {
    %c0_i32 = arith.constant 0 : i32
    %c0_i32_0 = arith.constant 0 : i32
    %c0_i32_1 = arith.constant 0 : i32
    return %c0_i32, %c0_i32_0 : i32, i32
  }
  func.func @transform_9(%arg0: i32, %arg1: i32) -> (i32, i32, i32) {
    %c0_i32 = arith.constant 0 : i32
    %c0_i32_0 = arith.constant 0 : i32
    return %arg0, %arg1, %c0_i32 : i32, i32, i32
  }
}

</mosaic_0001>

<llo_original>
// kernel: tpu_custom_call.1
$region0: #{tpu_custom_call.1}
  #allocation0 [shape = 'u32[]', space=smem, size = 0x4, offset = 0x4, fixed_abs, tag = 'smem constant byte address 0x4 - core index']
  #allocation1 [shape = 'u32[72,128]{1,0:T(1,128)}', space=vmem, size = 0x9000, scoped, tag = 'internal scratch']
  %s0 = inlined_call_operand.hbm [shape: f32[2,64,128], index: 0, kind: input, shape index: {}]
  %s1 = inlined_call_operand.hbm [shape: f32[2,64,128], index: 1, kind: input, shape index: {}]
  %s2 = inlined_call_operand.hbm [shape: f32[2,64,128], index: 2, kind: input, shape index: {}]
  %s3 = inlined_call_operand.hbm [shape: f32[384,128], index: 3, kind: input, shape index: {}]
  %s4 = inlined_call_operand.vmem [shape: f32[1,128], index: 4, kind: input, shape index: {}]
  %s5 = inlined_call_operand.hbm [shape: f32[384,128], index: 5, kind: input, shape index: {}]
  %s6 = inlined_call_operand.vmem [shape: f32[1,128], index: 6, kind: input, shape index: {}]
  %s7 = inlined_call_operand.hbm [shape: f32[128,128], index: 7, kind: input, shape index: {}]
  %s8 = inlined_call_operand.vmem [shape: f32[1,128], index: 8, kind: input, shape index: {}]
  %s9 = inlined_call_operand.hbm [shape: f32[2,64,128], index: 9, kind: output, shape index: {}]
  %s10 = sld [smem:[#allocation0]]
  $region93: #{tpu_custom_call.1} parent=0
    _
  %s12 = ssub.s32 1, %s10
  %s13 = scalar_select 0, %s12, %s10
  $region1: #{tpu_custom_call.1} parent=0
    #allocation2 [shape = 'u8[8192]{0}', space=vmem, size = 0x2000, scoped, tag = 'input window, operand 0']
    #allocation3 [shape = 's32[2]{0}', space=sflag, size = 0x8, scoped, tag = 'scoped memory for tpu_custom_call.1']
    #allocation4 [shape = 's32[2]{0}', space=sflag, size = 0x8, scoped, tag = 'scoped memory for tpu_custom_call.1']
    #allocation5 [shape = 'u8[16384]{0}', space=vmem, size = 0x4000, scoped, tag = 'input window, operand 1']
    #allocation6 [shape = 's32[2]{0}', space=sflag, size = 0x8, scoped, tag = 'scoped memory for tpu_custom_call.1']
    #allocation7 [shape = 'u8[8192]{0}', space=vmem, size = 0x2000, scoped, tag = 'input window, operand 2']
    #allocation8 [shape = 'u8[196608]{0}', space=vmem, size = 0x30000, scoped, tag = 'input window, operand 3, single buffered']
    #allocation9 [shape = 's32[1]{0}', space=sflag, size = 0x4, scoped, tag = 'scoped memory for tpu_custom_call.1']
    #allocation10 [shape = 'u8[196608]{0}', space=vmem, size = 0x30000, scoped, tag = 'input window, operand 5, single buffered']
    #allocation11 [shape = 'u8[65536]{0}', space=vmem, size = 0x10000, scoped, tag = 'input window, operand 7, single buffered']
    #allocation12 [shape = 's32[1]{0}', space=sflag, size = 0x4, scoped, tag = 'scoped memory for tpu_custom_call.1']
    #allocation13 [shape = 'u8[16384]{0}', space=vmem, size = 0x4000, scoped, tag = 'output window, operand 0']
    %14 = vsyncpa [#allocation3], 0
    %s15 = scalar_lea.sflag [#allocation3], 1
    %16 = vsyncpa %s15, 0
    %17 = vsyncpa [#allocation6], 0
    %s18 = scalar_lea.sflag [#allocation6], 1
    %19 = vsyncpa %s18, 0
    %20 = vsyncpa [#allocation9], 0
    %21 = vsyncpa [#allocation12], 0
    %22 = vsyncpa [#allocation4], 0
    %s23 = scalar_lea.sflag [#allocation4], 1
    %24 = vsyncpa %s23, 0
    loop: start=0, step=1, limit=10
    $region2: #{tpu_custom_call.1} parent=1 // loop_pre_header
      _
    $region3: #{tpu_custom_call.1} parent=1 // loop_header
      %s26 = sphi 0, %s30
      %p27 = scmp.ge.s32.totalorder %s26, 10
      %s33 = sphi 0, %s45
      %s34 = sphi 0, %s41
      %s35 = sphi 0, %s33
      %s36 = sphi 0, %s34
      %s37 = sphi 0, %s35
      %s38 = sphi 0, %s36
      %s58 = sphi 0, %s60
      %s61 = sphi 0, %s58
      %s62 = sphi 0, %s61
      %s78 = sphi 0, %s62
      %s86 = sphi 0, %s88
      %s89 = sphi 0, %s86
      %s90 = sphi 0, %s89
      %s106 = sphi 0, %s90
      %s122 = sphi 0, %s124
      %s125 = sphi 0, %s122
      %s126 = sphi 0, %s125
      %s142 = sphi 0, %s126
      %s146 = sphi 0, %s146
      %s148 = sphi 0, %s146
      %s149 = sphi 0, %s148
      %s163 = sphi 0, %s149
      %s167 = sphi 0, %s167
      %s169 = sphi 0, %s167
      %s170 = sphi 0, %s169
      %s184 = sphi 0, %s170
      %s188 = sphi 0, %s188
      %s190 = sphi 0, %s188
      %s191 = sphi 0, %s190
      %s205 = sphi 0, %s191
      %s209 = sphi 0, %s209
      %s211 = sphi 0, %s209
      %s212 = sphi 0, %s211
      %s226 = sphi 0, %s212
      %s230 = sphi 0, %s230
      %s232 = sphi 0, %s230
      %s233 = sphi 0, %s232
      %s247 = sphi 0, %s233
      %s251 = sphi 0, %s251
      %s253 = sphi 0, %s251
      %s254 = sphi 0, %s253
      %s268 = sphi 0, %s254
      %s276 = sphi 0, %s278
      %s279 = sphi 0, %s276
      %s280 = sphi 0, %s279
      %s296 = sphi 0, %s280
    $region4: #{tpu_custom_call.1} parent=1 // loop_header_branch
      %29 = sbr.rel (%p27) target = $region8
    $region5: #{tpu_custom_call.1} parent=1 // loop_body
      %s31 = ssub.s32 %s26, 1
      %s32 = ssub.s32 %s26, 2
      %s39 = sadd.s32 1, %s34
      %p40 = scmp.ge.s32.totalorder %s39, 4
      %s41 = scalar_select %p40, 0, %s39
      %s42 = sadd.s32 1, %s33
      %s43 = scalar_select %p40, %s42, %s33
      %p44 = scmp.ge.s32.totalorder %s43, 2
      %s45 = scalar_select %p44, 0, %s43
      %s46 = smul.u32 %s34, 2
      %s47 = ssub.s32 %s46, 1
      %p48 = scmp.gt.s32.totalorder %s47, 0
      %s49 = scalar_select %p48, %s47, 0
      %s50 = smul.u32 %s41, 2
      %s51 = ssub.s32 %s50, 1
      %p52 = scmp.gt.s32.totalorder %s51, 0
      %s53 = scalar_select %p52, %s51, 0
      %s54 = ssub.s32 %s33, %s45
      %s55 = ssub.s32 %s49, %s53
      %s56 = sor.u32 %s54, %s55
      %p57 = scmp.eq.s32.totalorder %s56, 0
      %s59 = sadd.s32 %s58, 1
      %s60 = scalar_select %p57, %s58, %s59
      %p63 = pneg %p57
      %p64 = scmp.eq.s32.totalorder %s26, 7
      %p65 = por %p63, %p64
      %p66 = scmp.ne.s32.totalorder %s58, %s61
      %p67 = scmp.eq.s32.totalorder %s26, 0
      %p68 = por %p66, %p67
      %p69 = scmp.ne.s32.totalorder %s58, %s61
      %p70 = scmp.eq.s32.totalorder %s31, 7
      %p71 = por %p69, %p70
      %p72 = scmp.ne.s32.totalorder %s61, %s62
      %p73 = scmp.eq.s32.totalorder %s31, 0
      %p74 = por %p72, %p73
      %p75 = scmp.ne.s32.totalorder %s61, %s62
      %p76 = scmp.eq.s32.totalorder %s32, 7
      %p77 = por %p75, %p76
      %p79 = scmp.ne.s32.totalorder %s62, %s78
      %p80 = scmp.eq.s32.totalorder %s32, 0
      %p81 = por %p79, %p80
      %s82 = ssub.s32 %s33, %s45
      %s83 = ssub.s32 %s34, %s41
      %s84 = sor.u32 %s82, %s83
      %p85 = scmp.eq.s32.totalorder %s84, 0
      %s87 = sadd.s32 %s86, 1
      %s88 = scalar_select %p85, %s86, %s87
      %p91 = pneg %p85
      %p92 = scmp.eq.s32.totalorder %s26, 7
      %p93 = por %p91, %p92
      %p94 = scmp.ne.s32.totalorder %s86, %s89
      %p95 = scmp.eq.s32.totalorder %s26, 0
      %p96 = por %p94, %p95
      %p97 = scmp.ne.s32.totalorder %s86, %s89
      %p98 = scmp.eq.s32.totalorder %s31, 7
      %p99 = por %p97, %p98
      %p100 = scmp.ne.s32.totalorder %s89, %s90
      %p101 = scmp.eq.s32.totalorder %s31, 0
      %p102 = por %p100, %p101
      %p103 = scmp.ne.s32.totalorder %s89, %s90
      %p104 = scmp.eq.s32.totalorder %s32, 7
      %p105 = por %p103, %p104
      %p107 = scmp.ne.s32.totalorder %s90, %s106
      %p108 = scmp.eq.s32.totalorder %s32, 0
      %p109 = por %p107, %p108
      %s110 = sadd.s32 %s34, 1
      %s111 = smul.u32 %s110, 2
      %p112 = scmp.lt.s32.totalorder %s111, 7
      %s113 = scalar_select %p112, %s111, 7
      %s114 = sadd.s32 %s41, 1
      %s115 = smul.u32 %s114, 2
      %p116 = scmp.lt.s32.totalorder %s115, 7
      %s117 = scalar_select %p116, %s115, 7
      %s118 = ssub.s32 %s33, %s45
      %s119 = ssub.s32 %s113, %s117
      %s120 = sor.u32 %s118, %s119
      %p121 = scmp.eq.s32.totalorder %s120, 0
      %s123 = sadd.s32 %s122, 1
      %s124 = scalar_select %p121, %s122, %s123
      %p127 = pneg %p121
      %p128 = scmp.eq.s32.totalorder %s26, 7
      %p129 = por %p127, %p128
      %p130 = scmp.ne.s32.totalorder %s122, %s125
      %p131 = scmp.eq.s32.totalorder %s26, 0
      %p132 = por %p130, %p131
      %p133 = scmp.ne.s32.totalorder %s122, %s125
      %p134 = scmp.eq.s32.totalorder %s31, 7
      %p135 = por %p133, %p134
      %p136 = scmp.ne.s32.totalorder %s125, %s126
      %p137 = scmp.eq.s32.totalorder %s31, 0
      %p138 = por %p136, %p137
      %p139 = scmp.ne.s32.totalorder %s125, %s126
      %p140 = scmp.eq.s32.totalorder %s32, 7
      %p141 = por %p139, %p140
      %p143 = scmp.ne.s32.totalorder %s126, %s142
      %p144 = scmp.eq.s32.totalorder %s32, 0
      %p145 = por %p143, %p144
      %s147 = sadd.s32 %s146, 1
      %p150 = scmp.eq.s32.totalorder %s26, 7
      %p151 = scmp.ne.s32.totalorder %s146, %s148
      %p152 = scmp.eq.s32.totalorder %s26, 0
      %p153 = por %p151, %p152
      %p154 = scmp.ne.s32.totalorder %s146, %s148
      %p155 = scmp.eq.s32.totalorder %s31, 7
      %p156 = por %p154, %p155
      %p157 = scmp.ne.s32.totalorder %s148, %s149
      %p158 = scmp.eq.s32.totalorder %s31, 0
      %p159 = por %p157, %p158
      %p160 = scmp.ne.s32.totalorder %s148, %s149
      %p161 = scmp.eq.s32.totalorder %s32, 7
      %p162 = por %p160, %p161
      %p164 = scmp.ne.s32.totalorder %s149, %s163
      %p165 = scmp.eq.s32.totalorder %s32, 0
      %p166 = por %p164, %p165
      %s168 = sadd.s32 %s167, 1
      %p171 = scmp.eq.s32.totalorder %s26, 7
      %p172 = scmp.ne.s32.totalorder %s167, %s169
      %p173 = scmp.eq.s32.totalorder %s26, 0
      %p174 = por %p172, %p173
      %p175 = scmp.ne.s32.totalorder %s167, %s169
      %p176 = scmp.eq.s32.totalorder %s31, 7
      %p177 = por %p175, %p176
      %p178 = scmp.ne.s32.totalorder %s169, %s170
      %p179 = scmp.eq.s32.totalorder %s31, 0
      %p180 = por %p178, %p179
      %p181 = scmp.ne.s32.totalorder %s169, %s170
      %p182 = scmp.eq.s32.totalorder %s32, 7
      %p183 = por %p181, %p182
      %p185 = scmp.ne.s32.totalorder %s170, %s184
      %p186 = scmp.eq.s32.totalorder %s32, 0
      %p187 = por %p185, %p186
      %s189 = sadd.s32 %s188, 1
      %p192 = scmp.eq.s32.totalorder %s26, 7
      %p193 = scmp.ne.s32.totalorder %s188, %s190
      %p194 = scmp.eq.s32.totalorder %s26, 0
      %p195 = por %p193, %p194
      %p196 = scmp.ne.s32.totalorder %s188, %s190
      %p197 = scmp.eq.s32.totalorder %s31, 7
      %p198 = por %p196, %p197
      %p199 = scmp.ne.s32.totalorder %s190, %s191
      %p200 = scmp.eq.s32.totalorder %s31, 0
      %p201 = por %p199, %p200
      %p202 = scmp.ne.s32.totalorder %s190, %s191
      %p203 = scmp.eq.s32.totalorder %s32, 7
      %p204 = por %p202, %p203
      %p206 = scmp.ne.s32.totalorder %s191, %s205
      %p207 = scmp.eq.s32.totalorder %s32, 0
      %p208 = por %p206, %p207
      %s210 = sadd.s32 %s209, 1
      %p213 = scmp.eq.s32.totalorder %s26, 7
      %p214 = scmp.ne.s32.totalorder %s209, %s211
      %p215 = scmp.eq.s32.totalorder %s26, 0
      %p216 = por %p214, %p215
      %p217 = scmp.ne.s32.totalorder %s209, %s211
      %p218 = scmp.eq.s32.totalorder %s31, 7
      %p219 = por %p217, %p218
      %p220 = scmp.ne.s32.totalorder %s211, %s212
      %p221 = scmp.eq.s32.totalorder %s31, 0
      %p222 = por %p220, %p221
      %p223 = scmp.ne.s32.totalorder %s211, %s212
      %p224 = scmp.eq.s32.totalorder %s32, 7
      %p225 = por %p223, %p224
      %p227 = scmp.ne.s32.totalorder %s212, %s226
      %p228 = scmp.eq.s32.totalorder %s32, 0
      %p229 = por %p227, %p228
      %s231 = sadd.s32 %s230, 1
      %p234 = scmp.eq.s32.totalorder %s26, 7
      %p235 = scmp.ne.s32.totalorder %s230, %s232
      %p236 = scmp.eq.s32.totalorder %s26, 0
      %p237 = por %p235, %p236
      %p238 = scmp.ne.s32.totalorder %s230, %s232
      %p239 = scmp.eq.s32.totalorder %s31, 7
      %p240 = por %p238, %p239
      %p241 = scmp.ne.s32.totalorder %s232, %s233
      %p242 = scmp.eq.s32.totalorder %s31, 0
      %p243 = por %p241, %p242
      %p244 = scmp.ne.s32.totalorder %s232, %s233
      %p245 = scmp.eq.s32.totalorder %s32, 7
      %p246 = por %p244, %p245
      %p248 = scmp.ne.s32.totalorder %s233, %s247
      %p249 = scmp.eq.s32.totalorder %s32, 0
      %p250 = por %p248, %p249
      %s252 = sadd.s32 %s251, 1
      %p255 = scmp.eq.s32.totalorder %s26, 7
      %p256 = scmp.ne.s32.totalorder %s251, %s253
      %p257 = scmp.eq.s32.totalorder %s26, 0
      %p258 = por %p256, %p257
      %p259 = scmp.ne.s32.totalorder %s251, %s253
      %p260 = scmp.eq.s32.totalorder %s31, 7
      %p261 = por %p259, %p260
      %p262 = scmp.ne.s32.totalorder %s253, %s254
      %p263 = scmp.eq.s32.totalorder %s31, 0
      %p264 = por %p262, %p263
      %p265 = scmp.ne.s32.totalorder %s253, %s254
      %p266 = scmp.eq.s32.totalorder %s32, 7
      %p267 = por %p265, %p266
      %p269 = scmp.ne.s32.totalorder %s254, %s268
      %p270 = scmp.eq.s32.totalorder %s32, 0
      %p271 = por %p269, %p270
      %s272 = ssub.s32 %s33, %s45
      %s273 = ssub.s32 %s34, %s41
      %s274 = sor.u32 %s272, %s273
      %p275 = scmp.eq.s32.totalorder %s274, 0
      %s277 = sadd.s32 %s276, 1
      %s278 = scalar_select %p275, %s276, %s277
      %p281 = pneg %p275
      %p282 = scmp.eq.s32.totalorder %s26, 7
      %p283 = por %p281, %p282
      %p284 = scmp.ne.s32.totalorder %s276, %s279
      %p285 = scmp.eq.s32.totalorder %s26, 0
      %p286 = por %p284, %p285
      %p287 = scmp.ne.s32.totalorder %s276, %s279
      %p288 = scmp.eq.s32.totalorder %s31, 7
      %p289 = por %p287, %p288
      %p290 = scmp.ne.s32.totalorder %s279, %s280
      %p291 = scmp.eq.s32.totalorder %s31, 0
      %p292 = por %p290, %p291
      %p293 = scmp.ne.s32.totalorder %s279, %s280
      %p294 = scmp.eq.s32.totalorder %s32, 7
      %p295 = por %p293, %p294
      %p297 = scmp.ne.s32.totalorder %s280, %s296
      %p298 = scmp.eq.s32.totalorder %s32, 0
      %p299 = por %p297, %p298
      %p300 = scmp.le.s32.totalorder 1, %s26
      %p301 = scmp.lt.s32.totalorder %s26, 9
      %p302 = pnand %p300, %p301
      %p303 = pneg %p302
      // Predicated region
      $region9: #{tpu_custom_call.1} parent=5 // pred_check
        _
      $region10: #{tpu_custom_call.1} parent=5 // pred_check_branch
        %305 = sbr.rel (%p302) target = $region12
      $region11: #{tpu_custom_call.1} parent=5 // pred_region
        %s306 = ssub.s32 %s26, 1
        // Predicated region
        $region13: #{tpu_custom_call.1} parent=11 // pred_check
          %p307 = pneg %p159
        $region14: #{tpu_custom_call.1} parent=11 // pred_check_branch
          %309 = sbr.rel (%p307) target = $region16
        $region15: #{tpu_custom_call.1} parent=11 // pred_region
          %311 = vsyncadd [#allocation9], 0
          %s312 = sshll.u32 %s3, 4
          %s313 = int_to_ptr.hbm [resolvable:$true] %s312
          %s314 = sshll.u32 [#allocation8], 4
          %s315 = int_to_ptr.vmem [resolvable:$true] %s314
          %320 = dma.hbm_to_vmem [thread:$0]  %s313, 6144, %s315, [#allocation9], 128, 128, 8
        $region16: #{tpu_custom_call.1} parent=11 // pred_fallthru
          _
        // Predicated region
        $region17: #{tpu_custom_call.1} parent=11 // pred_check
          %p321 = pneg %p180
        $region18: #{tpu_custom_call.1} parent=11 // pred_check_branch
          %323 = sbr.rel (%p321) target = $region20
        $region19: #{tpu_custom_call.1} parent=11 // pred_region
          _
        $region20: #{tpu_custom_call.1} parent=11 // pred_fallthru
          _
        // Predicated region
        $region21: #{tpu_custom_call.1} parent=11 // pred_check
          %p324 = pneg %p201
        $region22: #{tpu_custom_call.1} parent=11 // pred_check_branch
          %326 = sbr.rel (%p324) target = $region24
        $region23: #{tpu_custom_call.1} parent=11 // pred_region
          %328 = vsyncadd [#allocation9], 0
          %s329 = sshll.u32 %s5, 4
          %s330 = int_to_ptr.hbm [resolvable:$true] %s329
          %s331 = sshll.u32 [#allocation10], 4
          %s332 = int_to_ptr.vmem [resolvable:$true] %s331
          %337 = dma.hbm_to_vmem [thread:$0]  %s330, 6144, %s332, [#allocation9], 128, 128, 8
        $region24: #{tpu_custom_call.1} parent=11 // pred_fallthru
          _
        // Predicated region
        $region25: #{tpu_custom_call.1} parent=11 // pred_check
          %p338 = pneg %p222
        $region26: #{tpu_custom_call.1} parent=11 // pred_check_branch
          %340 = sbr.rel (%p338) target = $region28
        $region27: #{tpu_custom_call.1} parent=11 // pred_region
          _
        $region28: #{tpu_custom_call.1} parent=11 // pred_fallthru
          _
        // Predicated region
        $region29: #{tpu_custom_call.1} parent=11 // pred_check
          %p341 = pneg %p243
        $region30: #{tpu_custom_call.1} parent=11 // pred_check_branch
          %343 = sbr.rel (%p341) target = $region32
        $region31: #{tpu_custom_call.1} parent=11 // pred_region
          %345 = vsyncadd [#allocation12], 0
          %s346 = sshll.u32 %s7, 4
          %s347 = int_to_ptr.hbm [resolvable:$true] %s346
          %s348 = sshll.u32 [#allocation11], 4
          %s349 = int_to_ptr.vmem [resolvable:$true] %s348
          %354 = dma.hbm_to_vmem [thread:$0]  %s347, 2048, %s349, [#allocation12], 128, 128, 8
        $region32: #{tpu_custom_call.1} parent=11 // pred_fallthru
          _
        // Predicated region
        $region33: #{tpu_custom_call.1} parent=11 // pred_check
          %p355 = pneg %p264
        $region34: #{tpu_custom_call.1} parent=11 // pred_check_branch
          %357 = sbr.rel (%p355) target = $region36
        $region35: #{tpu_custom_call.1} parent=11 // pred_region
          _
        $region36: #{tpu_custom_call.1} parent=11 // pred_fallthru
          _
      $region12: #{tpu_custom_call.1} parent=5 // pred_fallthru
        _
      %p358 = scmp.lt.s32.totalorder %s26, 8
      // Predicated region
      $region37: #{tpu_custom_call.1} parent=5 // pred_check
        %p359 = pneg %p358
      $region38: #{tpu_custom_call.1} parent=5 // pred_check_branch
        %361 = sbr.rel (%p359) target = $region40
      $region39: #{tpu_custom_call.1} parent=5 // pred_region
        // Predicated region
        $region41: #{tpu_custom_call.1} parent=39 // pred_check
          %p362 = pneg %p68
        $region42: #{tpu_custom_call.1} parent=39 // pred_check_branch
          %364 = sbr.rel (%p362) target = $region44
        $region43: #{tpu_custom_call.1} parent=39 // pred_region
          %s365 = sand.u32 %s58, 1
          %s366 = scalar_lea.sflag [#allocation3], %s365
          %s367 = sand.u32 %s58, 1
          %s368 = smul.addr %s367, 8
          %s369 = scalar_lea.vmem [#allocation2], %s368
          %s370 = smul.u32 %s34, 2
          %s371 = ssub.s32 %s370, 1
          %p372 = scmp.gt.s32.totalorder %s371, 0
          %s373 = scalar_select %p372, %s371, 0
          %375 = vsyncadd %s366, 0
          %s376 = smul.addr %s33, 8
          %s377 = sadd.s32 %s373, %s376
          %s378 = smul.addr %s377, 8
          %s379 = scalar_lea.hbm %s0, %s378
          %s381 = sshll.u32 %s379, 4
          %s382 = int_to_ptr.hbm [resolvable:$true] %s381
          %s383 = sshll.u32 %s369, 4
          %s384 = int_to_ptr.vmem [resolvable:$true] %s383
          %386 = dma.hbm_to_vmem [thread:$0]  %s382, 128, %s384, %s366
        $region44: #{tpu_custom_call.1} parent=39 // pred_fallthru
          _
        // Predicated region
        $region45: #{tpu_custom_call.1} parent=39 // pred_check
          %p387 = pneg %p96
        $region46: #{tpu_custom_call.1} parent=39 // pred_check_branch
          %389 = sbr.rel (%p387) target = $region48
        $region47: #{tpu_custom_call.1} parent=39 // pred_region
          %s390 = sand.u32 %s26, 1
          %s391 = scalar_lea.sflag [#allocation6], %s390
          %s392 = sand.u32 %s86, 1
          %s393 = smul.addr %s392, 16
          %s394 = scalar_lea.vmem [#allocation5], %s393
          %s395 = smul.u32 2, %s34
          %397 = vsyncadd %s391, 0
          %s398 = smul.addr %s33, 8
          %s399 = sadd.s32 %s395, %s398
          %s400 = smul.addr %s399, 8
          %s401 = scalar_lea.hbm %s1, %s400
          %s402 = sshll.u32 %s401, 4
          %s403 = int_to_ptr.hbm [resolvable:$true] %s402
          %s404 = sshll.u32 %s394, 4
          %s405 = int_to_ptr.vmem [resolvable:$true] %s404
          %410 = dma.hbm_to_vmem [thread:$0]  %s403, 256, %s405, %s391, 128, 128, 8
        $region48: #{tpu_custom_call.1} parent=39 // pred_fallthru
          _
        // Predicated region
        $region49: #{tpu_custom_call.1} parent=39 // pred_check
          %p411 = pneg %p132
        $region50: #{tpu_custom_call.1} parent=39 // pred_check_branch
          %413 = sbr.rel (%p411) target = $region52
        $region51: #{tpu_custom_call.1} parent=39 // pred_region
          %s414 = sand.u32 %s26, 1
          %s415 = scalar_lea.sflag [#allocation6], %s414
          %s416 = sand.u32 %s122, 1
          %s417 = smul.addr %s416, 8
          %s418 = scalar_lea.vmem [#allocation7], %s417
          %s419 = sadd.s32 %s34, 1
          %s420 = smul.u32 %s419, 2
          %p421 = scmp.lt.s32.totalorder %s420, 7
          %s422 = scalar_select %p421, %s420, 7
          %424 = vsyncadd %s415, 0
          %s425 = smul.addr %s33, 8
          %s426 = sadd.s32 %s422, %s425
          %s427 = smul.addr %s426, 8
          %s428 = scalar_lea.hbm %s2, %s427
          %s430 = sshll.u32 %s428, 4
          %s431 = int_to_ptr.hbm [resolvable:$true] %s430
          %s432 = sshll.u32 %s418, 4
          %s433 = int_to_ptr.vmem [resolvable:$true] %s432
          %435 = dma.hbm_to_vmem [thread:$0]  %s431, 128, %s433, %s415
        $region52: #{tpu_custom_call.1} parent=39 // pred_fallthru
          _
      $region40: #{tpu_custom_call.1} parent=5 // pred_fallthru
        _
      %p436 = scmp.le.s32.totalorder 1, %s26
      %p437 = scmp.lt.s32.totalorder %s26, 9
      %p438 = pnand %p436, %p437
      %p439 = pneg %p438
      // Predicated region
      $region53: #{tpu_custom_call.1} parent=5 // pred_check
        _
      $region54: #{tpu_custom_call.1} parent=5 // pred_check_branch
        %441 = sbr.rel (%p438) target = $region56
      $region55: #{tpu_custom_call.1} parent=5 // pred_region
        %s442 = ssub.s32 %s26, 1
        %s443 = sand.u32 %s61, 1
        %s444 = scalar_lea.sflag [#allocation3], %s443
        %s445 = sand.u32 %s61, 1
        %s446 = smul.addr %s445, 8
        %s447 = scalar_lea.vmem [#allocation2], %s446
        // Predicated region
        $region57: #{tpu_custom_call.1} parent=55 // pred_check
          %p448 = pneg %p74
        $region58: #{tpu_custom_call.1} parent=55 // pred_check_branch
          %450 = sbr.rel (%p448) target = $region60
        $region59: #{tpu_custom_call.1} parent=55 // pred_region
          %452 = dma.done %s444, 128
        $region60: #{tpu_custom_call.1} parent=55 // pred_fallthru
          _
        %s453 = sand.u32 %s31, 1
        %s454 = scalar_lea.sflag [#allocation6], %s453
        %s455 = sand.u32 %s89, 1
        %s456 = smul.addr %s455, 16
        %s457 = scalar_lea.vmem [#allocation5], %s456
        // Predicated region
        $region61: #{tpu_custom_call.1} parent=55 // pred_check
          %p458 = pneg %p102
        $region62: #{tpu_custom_call.1} parent=55 // pred_check_branch
          %460 = sbr.rel (%p458) target = $region64
        $region63: #{tpu_custom_call.1} parent=55 // pred_region
          %462 = dma.done %s454, 256
        $region64: #{tpu_custom_call.1} parent=55 // pred_fallthru
          _
        %s463 = sand.u32 %s31, 1
        %s464 = scalar_lea.sflag [#allocation6], %s463
        %s465 = sand.u32 %s125, 1
        %s466 = smul.addr %s465, 8
        %s467 = scalar_lea.vmem [#allocation7], %s466
        // Predicated region
        $region65: #{tpu_custom_call.1} parent=55 // pred_check
          %p468 = pneg %p138
        $region66: #{tpu_custom_call.1} parent=55 // pred_check_branch
          %470 = sbr.rel (%p468) target = $region68
        $region67: #{tpu_custom_call.1} parent=55 // pred_region
          %472 = dma.done %s464, 128
        $region68: #{tpu_custom_call.1} parent=55 // pred_fallthru
          _
        // Predicated region
        $region69: #{tpu_custom_call.1} parent=55 // pred_check
          %p473 = pneg %p159
        $region70: #{tpu_custom_call.1} parent=55 // pred_check_branch
          %475 = sbr.rel (%p473) target = $region72
        $region71: #{tpu_custom_call.1} parent=55 // pred_region
          %477 = dma.done [#allocation9], 6144
        $region72: #{tpu_custom_call.1} parent=55 // pred_fallthru
          _
        // Predicated region
        $region73: #{tpu_custom_call.1} parent=55 // pred_check
          %p478 = pneg %p201
        $region74: #{tpu_custom_call.1} parent=55 // pred_check_branch
          %480 = sbr.rel (%p478) target = $region76
        $region75: #{tpu_custom_call.1} parent=55 // pred_region
          %482 = dma.done [#allocation9], 6144
        $region76: #{tpu_custom_call.1} parent=55 // pred_fallthru
          _
        // Predicated region
        $region77: #{tpu_custom_call.1} parent=55 // pred_check
          %p483 = pneg %p243
        $region78: #{tpu_custom_call.1} parent=55 // pred_check_branch
          %485 = sbr.rel (%p483) target = $region80
        $region79: #{tpu_custom_call.1} parent=55 // pred_region
          %487 = dma.done [#allocation12], 2048
        $region80: #{tpu_custom_call.1} parent=55 // pred_fallthru
          _
        %s488 = sand.u32 %s61, 1
        %s489 = scalar_lea.sflag [#allocation3], %s488
        %s490 = sand.u32 %s61, 1
        %s491 = smul.addr %s490, 8
        %s492 = scalar_lea.vmem [#allocation2], %s491
        %p493 = pneg %p74
        %p494 = pneg %p71
        %s495 = sand.u32 %s31, 1
        %s496 = scalar_lea.sflag [#allocation6], %s495
        %s497 = sand.u32 %s89, 1
        %s498 = smul.addr %s497, 16
        %s499 = scalar_lea.vmem [#allocation5], %s498
        %p500 = pneg %p102
        %p501 = pneg %p99
        %s502 = sand.u32 %s31, 1
        %s503 = scalar_lea.sflag [#allocation6], %s502
        %s504 = sand.u32 %s125, 1
        %s505 = smul.addr %s504, 8
        %s506 = scalar_lea.vmem [#allocation7], %s505
        %p507 = pneg %p138
        %p508 = pneg %p135
        %p509 = pneg %p159
        %p510 = pneg %p156
        %p511 = pneg %p180
        %p512 = pneg %p177
        %p513 = pneg %p201
        %p514 = pneg %p198
        %p515 = pneg %p222
        %p516 = pneg %p219
        %p517 = pneg %p243
        %p518 = pneg %p240
        %p519 = pneg %p264
        %p520 = pneg %p261
        %p521 = pneg %p292
        %p522 = pneg %p289
        %s523 = sand.u32 %s279, 1
        %s524 = scalar_lea.sflag [#allocation4], %s523
        %s525 = sand.u32 %s279, 1
        %s526 = smul.addr %s525, 16
        %s527 = scalar_lea.vmem [#allocation13], %s526
        %s528 = smul.u32 %s36, 2
        %s529 = ssub.s32 %s528, 1
        %p530 = scmp.gt.s32.totalorder %s529, 0
        %s531 = scalar_select %p530, %s529, 0
        %s532 = smul.u32 2, %s36
        %s533 = sadd.s32 %s36, 1
        %s534 = smul.u32 %s533, 2
        %p535 = scmp.lt.s32.totalorder %s534, 7
        %s536 = scalar_select %p535, %s534, 7
        %s537 = smul.u32 2, %s36
        %v538 = vld [vmem:[%s447] sm:$0xff]
        %v539 = vld [vmem:[%s457] sm:$0xff]
        %v540 = vld [vmem:[%s457 + $0x8] sm:$0xff]
        %v541 = vld [vmem:[%s467] sm:$0xff]
        %s542 = smul.u32 %s36, 16
        %s543 = ssub.s32 %s542, 8
        %v544 = vlaneseq
        %v545 = vshrl.u32 %v544, 7
        %v546 = vadd.s32 %v545, 8
        %v547 = vadd.s32 %v545, 16
        %v548 = vadd.s32 %v545, 24
        %v549 = vstv %s543
        %v550 = vadd.s32 %v549, %v545
        %v551 = vadd.s32 %v549, %v546
        %v552 = vadd.s32 %v549, %v547
        %v553 = vadd.s32 %v549, %v548
        %vm554 = vcmp.ge.s32.totalorder %v550, 0
        %vm555 = vcmp.ge.s32.totalorder %v551, 0
        %vm556 = vcmp.ge.s32.totalorder %v552, 0
        %vm557 = vcmp.ge.s32.totalorder %v553, 0
        %vm558 = vcmp.lt.s32.totalorder %v550, 50
        %vm559 = vcmp.lt.s32.totalorder %v551, 50
        %vm560 = vcmp.lt.s32.totalorder %v552, 50
        %vm561 = vcmp.lt.s32.totalorder %v553, 50
        %vm562 = vmand %vm554, %vm558
        %vm563 = vmand %vm555, %vm559
        %vm564 = vmand %vm556, %vm560
        %vm565 = vmand %vm557, %vm561
        %v566 = vsel %vm562, 1, 0
        %v567 = vsel %vm563, 1, 0
        %v568 = vsel %vm564, 1, 0
        %v569 = vsel %vm565, 1, 0
        %vm570 = vcmp.eq.s32.totalorder %v566, 1
        %vm571 = vcmp.eq.s32.totalorder %v567, 1
        %vm572 = vcmp.eq.s32.totalorder %v568, 1
        %vm573 = vcmp.eq.s32.totalorder %v569, 1
        %v574 = vsel %vm570, %v538, 0.0
        %v575 = vsel %vm571, %v539, 0.0
        %v576 = vsel %vm572, %v540, 0.0
        %v577 = vsel %vm573, %v541, 0.0
        %v578 = vmul.f32 %v574, 0.5
        %v579 = vmul.f32 %v575, 0.5
        %v580 = vmul.f32 %v576, 0.5
        %v581 = vmul.f32 %v577, 0.5
        %v582 = vmul.f32 %v574, 0.70710677
        %v583 = vmul.f32 %v575, 0.70710677
        %v584 = vmul.f32 %v576, 0.70710677
        %v585 = vmul.f32 %v577, 0.70710677
        %v586 = vmul.f32 %v582, %v582
        %v587 = vmin.f32 16.0, %v586
        %v588 = vmul.f32 %v587, 2.1237322e-06
        %v589 = vadd.f32 %v588, 0.00028619796
        %v590 = vmul.f32 %v587, %v589
        %v591 = vadd.f32 %v590, 0.0036580483
        %v592 = vmul.f32 %v587, %v591
        %v593 = vadd.f32 %v592, 0.05243302
        %v594 = vmul.f32 %v587, %v593
        %v595 = vadd.f32 %v594, 0.18741608
        %v596 = vmul.f32 %v587, %v595
        %v597 = vadd.f32 %v596, 1.1283791
        %v598 = vmul.f32 %v582, %v597
        %v599 = vmul.f32 %v587, 3.8918573e-05
        %v600 = vadd.f32 %v599, 0.001143296
        %v601 = vmul.f32 %v587, %v600
        %v602 = vadd.f32 %v601, 0.014752088
        %v603 = vmul.f32 %v587, %v602
        %v604 = vadd.f32 %v603, 0.112945676
        %v605 = vmul.f32 %v587, %v604
        %v606 = vadd.f32 %v605, 0.4994258
        %v607 = vmul.f32 %v587, %v606
        %v608 = vadd.f32 %v607, 1.0
        %v609 = vrcp.pop %v608
        %v610 = vmul.f32 %v608, %v609
        %v611 = vsub.f32 1.0, %v610
        %v612 = vmul.f32 %v609, %v611
        %v613 = vadd.f32 %v609, %v612
        %vm614 = vweird.f32 %v608
        %vm615 = vweird.f32 %v609
        %vm616 = vmor %vm614, %vm615
        %v617 = vsel %vm616, %v609, %v613
        %v618 = vand.u32 2147483647, %v608
        %vm619 = vcmp.eq.f32.partialorder %v618, 8.507059e+37
        %v620 = vand.u32 %v608, 2147483648
        %v621 = vor.u32 1.1754944e-38, %v620
        %v622 = vsel %vm619, %v621, %v617
        %v623 = vmul.f32 %v598, %v622
        %v624 = vmin.f32 %v623, 1.0
        %v625 = vmax.f32 %v624, -1.0
        %v626 = vmul.f32 %v583, %v583
        %v627 = vmin.f32 16.0, %v626
        %v628 = vmul.f32 %v627, 2.1237322e-06
        %v629 = vadd.f32 %v628, 0.00028619796
        %v630 = vmul.f32 %v627, %v629
        %v631 = vadd.f32 %v630, 0.0036580483
        %v632 = vmul.f32 %v627, %v631
        %v633 = vadd.f32 %v632, 0.05243302
        %v634 = vmul.f32 %v627, %v633
        %v635 = vadd.f32 %v634, 0.18741608
        %v636 = vmul.f32 %v627, %v635
        %v637 = vadd.f32 %v636, 1.1283791
        %v638 = vmul.f32 %v583, %v637
        %v639 = vmul.f32 %v627, 3.8918573e-05
        %v640 = vadd.f32 %v639, 0.001143296
        %v641 = vmul.f32 %v627, %v640
        %v642 = vadd.f32 %v641, 0.014752088
        %v643 = vmul.f32 %v627, %v642
        %v644 = vadd.f32 %v643, 0.112945676
        %v645 = vmul.f32 %v627, %v644
        %v646 = vadd.f32 %v645, 0.4994258
        %v647 = vmul.f32 %v627, %v646
        %v648 = vadd.f32 %v647, 1.0
        %v649 = vrcp.pop %v648
        %v650 = vmul.f32 %v648, %v649
        %v651 = vsub.f32 1.0, %v650
        %v652 = vmul.f32 %v649, %v651
        %v653 = vadd.f32 %v649, %v652
        %vm654 = vweird.f32 %v648
        %vm655 = vweird.f32 %v649
        %vm656 = vmor %vm654, %vm655
        %v657 = vsel %vm656, %v649, %v653
        %v658 = vand.u32 2147483647, %v648
        %vm659 = vcmp.eq.f32.partialorder %v658, 8.507059e+37
        %v660 = vand.u32 %v648, 2147483648
        %v661 = vor.u32 1.1754944e-38, %v660
        %v662 = vsel %vm659, %v661, %v657
        %v663 = vmul.f32 %v638, %v662
        %v664 = vmin.f32 %v663, 1.0
        %v665 = vmax.f32 %v664, -1.0
        %v666 = vmul.f32 %v584, %v584
        %v667 = vmin.f32 16.0, %v666
        %v668 = vmul.f32 %v667, 2.1237322e-06
        %v669 = vadd.f32 %v668, 0.00028619796
        %v670 = vmul.f32 %v667, %v669
        %v671 = vadd.f32 %v670, 0.0036580483
        %v672 = vmul.f32 %v667, %v671
        %v673 = vadd.f32 %v672, 0.05243302
        %v674 = vmul.f32 %v667, %v673
        %v675 = vadd.f32 %v674, 0.18741608
        %v676 = vmul.f32 %v667, %v675
        %v677 = vadd.f32 %v676, 1.1283791
        %v678 = vmul.f32 %v584, %v677
        %v679 = vmul.f32 %v667, 3.8918573e-05
        %v680 = vadd.f32 %v679, 0.001143296
        %v681 = vmul.f32 %v667, %v680
        %v682 = vadd.f32 %v681, 0.014752088
        %v683 = vmul.f32 %v667, %v682
        %v684 = vadd.f32 %v683, 0.112945676
        %v685 = vmul.f32 %v667, %v684
        %v686 = vadd.f32 %v685, 0.4994258
        %v687 = vmul.f32 %v667, %v686
        %v688 = vadd.f32 %v687, 1.0
        %v689 = vrcp.pop %v688
        %v690 = vmul.f32 %v688, %v689
        %v691 = vsub.f32 1.0, %v690
        %v692 = vmul.f32 %v689, %v691
        %v693 = vadd.f32 %v689, %v692
        %vm694 = vweird.f32 %v688
        %vm695 = vweird.f32 %v689
        %vm696 = vmor %vm694, %vm695
        %v697 = vsel %vm696, %v689, %v693
        %v698 = vand.u32 2147483647, %v688
        %vm699 = vcmp.eq.f32.partialorder %v698, 8.507059e+37
        %v700 = vand.u32 %v688, 2147483648
        %v701 = vor.u32 1.1754944e-38, %v700
        %v702 = vsel %vm699, %v701, %v697
        %v703 = vmul.f32 %v678, %v702
        %v704 = vmin.f32 %v703, 1.0
        %v705 = vmax.f32 %v704, -1.0
        %v706 = vmul.f32 %v585, %v585
        %v707 = vmin.f32 16.0, %v706
        %v708 = vmul.f32 %v707, 2.1237322e-06
        %v709 = vadd.f32 %v708, 0.00028619796
        %v710 = vmul.f32 %v707, %v709
        %v711 = vadd.f32 %v710, 0.0036580483
        %v712 = vmul.f32 %v707, %v711
        %v713 = vadd.f32 %v712, 0.05243302
        %v714 = vmul.f32 %v707, %v713
        %v715 = vadd.f32 %v714, 0.18741608
        %v716 = vmul.f32 %v707, %v715
        %v717 = vadd.f32 %v716, 1.1283791
        %v718 = vmul.f32 %v585, %v717
        %v719 = vmul.f32 %v707, 3.8918573e-05
        %v720 = vadd.f32 %v719, 0.001143296
        %v721 = vmul.f32 %v707, %v720
        %v722 = vadd.f32 %v721, 0.014752088
        %v723 = vmul.f32 %v707, %v722
        %v724 = vadd.f32 %v723, 0.112945676
        %v725 = vmul.f32 %v707, %v724
        %v726 = vadd.f32 %v725, 0.4994258
        %v727 = vmul.f32 %v707, %v726
        %v728 = vadd.f32 %v727, 1.0
        %v729 = vrcp.pop %v728
        %v730 = vmul.f32 %v728, %v729
        %v731 = vsub.f32 1.0, %v730
        %v732 = vmul.f32 %v729, %v731
        %v733 = vadd.f32 %v729, %v732
        %vm734 = vweird.f32 %v728
        %vm735 = vweird.f32 %v729
        %vm736 = vmor %vm734, %vm735
        %v737 = vsel %vm736, %v729, %v733
        %v738 = vand.u32 2147483647, %v728
        %vm739 = vcmp.eq.f32.partialorder %v738, 8.507059e+37
        %v740 = vand.u32 %v728, 2147483648
        %v741 = vor.u32 1.1754944e-38, %v740
        %v742 = vsel %vm739, %v741, %v737
        %v743 = vmul.f32 %v718, %v742
        %v744 = vmin.f32 %v743, 1.0
        %v745 = vmax.f32 %v744, -1.0
        %v746 = vadd.f32 %v625, 1.0
        %v747 = vadd.f32 %v665, 1.0
        %v748 = vadd.f32 %v705, 1.0
        %v749 = vadd.f32 %v745, 1.0
        %v750 = vmul.f32 %v578, %v746
        %v751 = vmul.f32 %v579, %v747
        %v752 = vmul.f32 %v580, %v748
        %v753 = vmul.f32 %v581, %v749
        %vm758 = vcmask 1046528
        %v759 = vrot.slane %v750, 1
        %v760 = vrot.slane %v751, 1
        %v761 = vsel %vm758, %v759, %v760
        %v762 = vrot.slane %v752, 1
        %v763 = vsel %vm758, %v760, %v762
        %v764 = vrot.slane %v753, 1
        %v765 = vsel %vm758, %v762, %v764
        %vm766 = vcmask 1045504
        %v767 = vrot.slane %v751, 2
        %v768 = vrot.slane %v752, 2
        %v769 = vsel %vm766, %v767, %v768
        %v770 = vrot.slane %v753, 2
        %v771 = vsel %vm766, %v768, %v770
        %v772 = vld [vmem:[#allocation8] sm:$0xff]
        %v773 = vld [vmem:[#allocation8 + $0x8] sm:$0xff]
        %v774 = vld [vmem:[#allocation8 + $0x10] sm:$0xff]
        %v775 = vld [vmem:[#allocation8 + $0x18] sm:$0xff]
        %v776 = vld [vmem:[#allocation8 + $0x20] sm:$0xff]
        %v777 = vld [vmem:[#allocation8 + $0x28] sm:$0xff]
        %v778 = vld [vmem:[#allocation8 + $0x30] sm:$0xff]
        %v779 = vld [vmem:[#allocation8 + $0x38] sm:$0xff]
        %v780 = vld [vmem:[#allocation8 + $0x40] sm:$0xff]
        %v781 = vld [vmem:[#allocation8 + $0x48] sm:$0xff]
        %v782 = vld [vmem:[#allocation8 + $0x50] sm:$0xff]
        %v783 = vld [vmem:[#allocation8 + $0x58] sm:$0xff]
        %v784 = vld [vmem:[#allocation8 + $0x60] sm:$0xff]
        %v785 = vld [vmem:[#allocation8 + $0x68] sm:$0xff]
        %v786 = vld [vmem:[#allocation8 + $0x70] sm:$0xff]
        %v787 = vld [vmem:[#allocation8 + $0x78] sm:$0xff]
        %v788 = vld [vmem:[#allocation8 + $0x80] sm:$0xff]
        %v789 = vld [vmem:[#allocation8 + $0x88] sm:$0xff]
        %v790 = vld [vmem:[#allocation8 + $0x90] sm:$0xff]
        %v791 = vld [vmem:[#allocation8 + $0x98] sm:$0xff]
        %v792 = vld [vmem:[#allocation8 + $0xa0] sm:$0xff]
        %v793 = vld [vmem:[#allocation8 + $0xa8] sm:$0xff]
        %v794 = vld [vmem:[#allocation8 + $0xb0] sm:$0xff]
        %v795 = vld [vmem:[#allocation8 + $0xb8] sm:$0xff]
        %v796 = vld [vmem:[#allocation8 + $0xc0] sm:$0xff]
        %v797 = vld [vmem:[#allocation8 + $0xc8] sm:$0xff]
        %v798 = vld [vmem:[#allocation8 + $0xd0] sm:$0xff]
        %v799 = vld [vmem:[#allocation8 + $0xd8] sm:$0xff]
        %v800 = vld [vmem:[#allocation8 + $0xe0] sm:$0xff]
        %v801 = vld [vmem:[#allocation8 + $0xe8] sm:$0xff]
        %v802 = vld [vmem:[#allocation8 + $0xf0] sm:$0xff]
        %v803 = vld [vmem:[#allocation8 + $0xf8] sm:$0xff]
        %v804 = vld [vmem:[#allocation8 + $0x100] sm:$0xff]
        %v805 = vld [vmem:[#allocation8 + $0x108] sm:$0xff]
        %v806 = vld [vmem:[#allocation8 + $0x110] sm:$0xff]
        %v807 = vld [vmem:[#allocation8 + $0x118] sm:$0xff]
        %v808 = vld [vmem:[#allocation8 + $0x120] sm:$0xff]
        %v809 = vld [vmem:[#allocation8 + $0x128] sm:$0xff]
        %v810 = vld [vmem:[#allocation8 + $0x130] sm:$0xff]
        %v811 = vld [vmem:[#allocation8 + $0x138] sm:$0xff]
        %v812 = vld [vmem:[#allocation8 + $0x140] sm:$0xff]
        %v813 = vld [vmem:[#allocation8 + $0x148] sm:$0xff]
        %v814 = vld [vmem:[#allocation8 + $0x150] sm:$0xff]
        %v815 = vld [vmem:[#allocation8 + $0x158] sm:$0xff]
        %v816 = vld [vmem:[#allocation8 + $0x160] sm:$0xff]
        %v817 = vld [vmem:[#allocation8 + $0x168] sm:$0xff]
        %v818 = vld [vmem:[#allocation8 + $0x170] sm:$0xff]
        %v819 = vld [vmem:[#allocation8 + $0x178] sm:$0xff]
        %v820 = vld [vmem:[%s4] sm:$0x1]
        %v822 = vperm.slane %v820, 0
        %vm824 = vcmask 1041408
        %v825 = vrot.slane %v750, 6
        %v826 = vrot.slane %v751, 6
        %v827 = vsel %vm824, %v825, %v826
        %v828 = vrot.slane %v761, 6
        %v829 = vrot.slane %v763, 6
        %v830 = vsel %vm824, %v828, %v829
        %v831 = vrot.slane %v767, 6
        %v832 = vrot.slane %v769, 6
        %v833 = vsel %vm824, %v831, %v832
        %v834 = vrot.slane %v752, 6
        %v835 = vsel %vm824, %v826, %v834
        %v836 = vrot.slane %v765, 6
        %v837 = vsel %vm824, %v829, %v836
        %v838 = vrot.slane %v771, 6
        %v839 = vsel %vm824, %v832, %v838
        %849 = vmatpush.msra.mxu0 %v787
        %850 = vmatpush.msra.mxu0 %v786
        %851 = vmatpush.msra.mxu0 %v785
        %852 = vmatpush.msra.mxu0 %v784
        %853 = vmatpush.msra.mxu0 %v783
        %854 = vmatpush.msra.mxu0 %v782
        %855 = vmatpush.msra.mxu0 %v781
        %856 = vmatpush.msra.mxu0 %v780
        %857 = vmatpush.msra.mxu0 %v779
        %858 = vmatpush.msra.mxu0 %v778
        %859 = vmatpush.msra.mxu0 %v777
        %860 = vmatpush.msra.mxu0 %v776
        %861 = vmatpush.msra.mxu0 %v775
        %862 = vmatpush.msra.mxu0 %v774
        %863 = vmatpush.msra.mxu0 %v773
        %864 = vmatpush.msra.mxu0 %v772
        %865 = vmatmul.f32.gmra.mxu0 %v827
        %v866 = vpop.f32.mrf.mxu0
        %v867 = vadd.f32 %v822, %v866
        %868 = vmatmul.f32.gmra.mxu0 %v835
        %v869 = vpop.f32.mrf.mxu0
        %v870 = vadd.f32 %v822, %v869
        %871 = vmatmul.f32.gmra.mxu0 %v834
        %v872 = vpop.f32.mrf.mxu0
        %v873 = vadd.f32 %v822, %v872
        %874 = vdwg.mxu0
        %875 = vmatpush.msra.mxu0 %v803
        %876 = vmatpush.msra.mxu0 %v802
        %877 = vmatpush.msra.mxu0 %v801
        %878 = vmatpush.msra.mxu0 %v800
        %879 = vmatpush.msra.mxu0 %v799
        %880 = vmatpush.msra.mxu0 %v798
        %881 = vmatpush.msra.mxu0 %v797
        %882 = vmatpush.msra.mxu0 %v796
        %883 = vmatpush.msra.mxu0 %v795
        %884 = vmatpush.msra.mxu0 %v794
        %885 = vmatpush.msra.mxu0 %v793
        %886 = vmatpush.msra.mxu0 %v792
        %887 = vmatpush.msra.mxu0 %v791
        %888 = vmatpush.msra.mxu0 %v790
        %889 = vmatpush.msra.mxu0 %v789
        %890 = vmatpush.msra.mxu0 %v788
        %891 = vmatmul.f32.gmra.mxu0 %v830
        %v892 = vpop.f32.mrf.mxu0
        %v893 = vadd.f32 %v867, %v892
        %894 = vmatmul.f32.gmra.mxu0 %v837
        %v895 = vpop.f32.mrf.mxu0
        %v896 = vadd.f32 %v870, %v895
        %897 = vmatmul.f32.gmra.mxu0 %v836
        %v898 = vpop.f32.mrf.mxu0
        %v899 = vadd.f32 %v873, %v898
        %900 = vdwg.mxu0
        %901 = vmatpush.msra.mxu0 %v819
        %902 = vmatpush.msra.mxu0 %v818
        %903 = vmatpush.msra.mxu0 %v817
        %904 = vmatpush.msra.mxu0 %v816
        %905 = vmatpush.msra.mxu0 %v815
        %906 = vmatpush.msra.mxu0 %v814
        %907 = vmatpush.msra.mxu0 %v813
        %908 = vmatpush.msra.mxu0 %v812
        %909 = vmatpush.msra.mxu0 %v811
        %910 = vmatpush.msra.mxu0 %v810
        %911 = vmatpush.msra.mxu0 %v809
        %912 = vmatpush.msra.mxu0 %v808
        %913 = vmatpush.msra.mxu0 %v807
        %914 = vmatpush.msra.mxu0 %v806
        %915 = vmatpush.msra.mxu0 %v805
        %916 = vmatpush.msra.mxu0 %v804
        %917 = vmatmul.f32.gmra.mxu0 %v833
        %v918 = vpop.f32.mrf.mxu0
        %v919 = vadd.f32 %v893, %v918
        %920 = vmatmul.f32.gmra.mxu0 %v839
        %v921 = vpop.f32.mrf.mxu0
        %v922 = vadd.f32 %v896, %v921
        %923 = vmatmul.f32.gmra.mxu0 %v838
        %v924 = vpop.f32.mrf.mxu0
        %v925 = vadd.f32 %v899, %v924
        %926 = vdwg.mxu0
        %s927 = ssub.s32 %s542, 1
        %v928 = vstv %s927
        %v929 = vadd.s32 %v928, %v545
        %v930 = vadd.s32 %v928, %v546
        %v931 = vadd.s32 %v928, %v547
        %vm932 = vcmp.ge.s32.totalorder %v929, 0
        %vm933 = vcmp.ge.s32.totalorder %v930, 0
        %vm934 = vcmp.ge.s32.totalorder %v931, 0
        %vm935 = vcmp.lt.s32.totalorder %v929, 50
        %vm936 = vcmp.lt.s32.totalorder %v930, 50
        %vm937 = vcmp.lt.s32.totalorder %v931, 50
        %vm938 = vmand %vm932, %vm935
        %vm939 = vmand %vm933, %vm936
        %vm940 = vmand %vm934, %vm937
        %v941 = vsel %vm938, 1, 0
        %v942 = vsel %vm939, 1, 0
        %v943 = vsel %vm940, 1, 0
        %vm944 = vcmp.eq.s32.totalorder %v941, 1
        %vm945 = vcmp.eq.s32.totalorder %v942, 1
        %vm946 = vcmp.eq.s32.totalorder %v943, 1
        %v947 = vsel %vm944, %v919, 0.0
        %v948 = vsel %vm945, %v922, 0.0
        %v949 = vsel %vm946, %v925, 0.0
        %v950 = vmul.f32 %v947, 0.5
        %v951 = vmul.f32 %v948, 0.5
        %v952 = vmul.f32 %v949, 0.5
        %v953 = vmul.f32 %v947, 0.70710677
        %v954 = vmul.f32 %v948, 0.70710677
        %v955 = vmul.f32 %v949, 0.70710677
        %v956 = vmul.f32 %v953, %v953
        %v957 = vmin.f32 16.0, %v956
        %v958 = vmul.f32 %v957, 2.1237322e-06
        %v959 = vadd.f32 %v958, 0.00028619796
        %v960 = vmul.f32 %v957, %v959
        %v961 = vadd.f32 %v960, 0.0036580483
        %v962 = vmul.f32 %v957, %v961
        %v963 = vadd.f32 %v962, 0.05243302
        %v964 = vmul.f32 %v957, %v963
        %v965 = vadd.f32 %v964, 0.18741608
        %v966 = vmul.f32 %v957, %v965
        %v967 = vadd.f32 %v966, 1.1283791
        %v968 = vmul.f32 %v953, %v967
        %v969 = vmul.f32 %v957, 3.8918573e-05
        %v970 = vadd.f32 %v969, 0.001143296
        %v971 = vmul.f32 %v957, %v970
        %v972 = vadd.f32 %v971, 0.014752088
        %v973 = vmul.f32 %v957, %v972
        %v974 = vadd.f32 %v973, 0.112945676
        %v975 = vmul.f32 %v957, %v974
        %v976 = vadd.f32 %v975, 0.4994258
        %v977 = vmul.f32 %v957, %v976
        %v978 = vadd.f32 %v977, 1.0
        %v979 = vrcp.pop %v978
        %v980 = vmul.f32 %v978, %v979
        %v981 = vsub.f32 1.0, %v980
        %v982 = vmul.f32 %v979, %v981
        %v983 = vadd.f32 %v979, %v982
        %vm984 = vweird.f32 %v978
        %vm985 = vweird.f32 %v979
        %vm986 = vmor %vm984, %vm985
        %v987 = vsel %vm986, %v979, %v983
        %v988 = vand.u32 2147483647, %v978
        %vm989 = vcmp.eq.f32.partialorder %v988, 8.507059e+37
        %v990 = vand.u32 %v978, 2147483648
        %v991 = vor.u32 1.1754944e-38, %v990
        %v992 = vsel %vm989, %v991, %v987
        %v993 = vmul.f32 %v968, %v992
        %v994 = vmin.f32 %v993, 1.0
        %v995 = vmax.f32 %v994, -1.0
        %v996 = vmul.f32 %v954, %v954
        %v997 = vmin.f32 16.0, %v996
        %v998 = vmul.f32 %v997, 2.1237322e-06
        %v999 = vadd.f32 %v998, 0.00028619796
        %v1000 = vmul.f32 %v997, %v999
        %v1001 = vadd.f32 %v1000, 0.0036580483
        %v1002 = vmul.f32 %v997, %v1001
        %v1003 = vadd.f32 %v1002, 0.05243302
        %v1004 = vmul.f32 %v997, %v1003
        %v1005 = vadd.f32 %v1004, 0.18741608
        %v1006 = vmul.f32 %v997, %v1005
        %v1007 = vadd.f32 %v1006, 1.1283791
        %v1008 = vmul.f32 %v954, %v1007
        %v1009 = vmul.f32 %v997, 3.8918573e-05
        %v1010 = vadd.f32 %v1009, 0.001143296
        %v1011 = vmul.f32 %v997, %v1010
        %v1012 = vadd.f32 %v1011, 0.014752088
        %v1013 = vmul.f32 %v997, %v1012
        %v1014 = vadd.f32 %v1013, 0.112945676
        %v1015 = vmul.f32 %v997, %v1014
        %v1016 = vadd.f32 %v1015, 0.4994258
        %v1017 = vmul.f32 %v997, %v1016
        %v1018 = vadd.f32 %v1017, 1.0
        %v1019 = vrcp.pop %v1018
        %v1020 = vmul.f32 %v1018, %v1019
        %v1021 = vsub.f32 1.0, %v1020
        %v1022 = vmul.f32 %v1019, %v1021
        %v1023 = vadd.f32 %v1019, %v1022
        %vm1024 = vweird.f32 %v1018
        %vm1025 = vweird.f32 %v1019
        %vm1026 = vmor %vm1024, %vm1025
        %v1027 = vsel %vm1026, %v1019, %v1023
        %v1028 = vand.u32 2147483647, %v1018
        %vm1029 = vcmp.eq.f32.partialorder %v1028, 8.507059e+37
        %v1030 = vand.u32 %v1018, 2147483648
        %v1031 = vor.u32 1.1754944e-38, %v1030
        %v1032 = vsel %vm1029, %v1031, %v1027
        %v1033 = vmul.f32 %v1008, %v1032
        %v1034 = vmin.f32 %v1033, 1.0
        %v1035 = vmax.f32 %v1034, -1.0
        %v1036 = vmul.f32 %v955, %v955
        %v1037 = vmin.f32 16.0, %v1036
        %v1038 = vmul.f32 %v1037, 2.1237322e-06
        %v1039 = vadd.f32 %v1038, 0.00028619796
        %v1040 = vmul.f32 %v1037, %v1039
        %v1041 = vadd.f32 %v1040, 0.0036580483
        %v1042 = vmul.f32 %v1037, %v1041
        %v1043 = vadd.f32 %v1042, 0.05243302
        %v1044 = vmul.f32 %v1037, %v1043
        %v1045 = vadd.f32 %v1044, 0.18741608
        %v1046 = vmul.f32 %v1037, %v1045
        %v1047 = vadd.f32 %v1046, 1.1283791
        %v1048 = vmul.f32 %v955, %v1047
        %v1049 = vmul.f32 %v1037, 3.8918573e-05
        %v1050 = vadd.f32 %v1049, 0.001143296
        %v1051 = vmul.f32 %v1037, %v1050
        %v1052 = vadd.f32 %v1051, 0.014752088
        %v1053 = vmul.f32 %v1037, %v1052
        %v1054 = vadd.f32 %v1053, 0.112945676
        %v1055 = vmul.f32 %v1037, %v1054
        %v1056 = vadd.f32 %v1055, 0.4994258
        %v1057 = vmul.f32 %v1037, %v1056
        %v1058 = vadd.f32 %v1057, 1.0
        %v1059 = vrcp.pop %v1058
        %v1060 = vmul.f32 %v1058, %v1059
        %v1061 = vsub.f32 1.0, %v1060
        %v1062 = vmul.f32 %v1059, %v1061
        %v1063 = vadd.f32 %v1059, %v1062
        %vm1064 = vweird.f32 %v1058
        %vm1065 = vweird.f32 %v1059
        %vm1066 = vmor %vm1064, %vm1065
        %v1067 = vsel %vm1066, %v1059, %v1063
        %v1068 = vand.u32 2147483647, %v1058
        %vm1069 = vcmp.eq.f32.partialorder %v1068, 8.507059e+37
        %v1070 = vand.u32 %v1058, 2147483648
        %v1071 = vor.u32 1.1754944e-38, %v1070
        %v1072 = vsel %vm1069, %v1071, %v1067
        %v1073 = vmul.f32 %v1048, %v1072
        %v1074 = vmin.f32 %v1073, 1.0
        %v1075 = vmax.f32 %v1074, -1.0
        %v1076 = vadd.f32 %v995, 1.0
        %v1077 = vadd.f32 %v1035, 1.0
        %v1078 = vadd.f32 %v1075, 1.0
        %v1079 = vmul.f32 %v950, %v1076
        %v1080 = vmul.f32 %v951, %v1077
        %v1081 = vmul.f32 %v952, %v1078
        %v1085 = vrot.slane %v1079, 1
        %v1086 = vrot.slane %v1080, 1
        %v1087 = vsel %vm758, %v1085, %v1086
        %v1088 = vrot.slane %v1081, 1
        %v1089 = vsel %vm758, %v1086, %v1088
        %v1092 = vrot.slane %v1079, 2
        %v1093 = vrot.slane %v1080, 2
        %v1094 = vsel %vm766, %v1092, %v1093
        %v1095 = vrot.slane %v1081, 2
        %v1096 = vsel %vm766, %v1093, %v1095
        %v1099 = vld [vmem:[#allocation10] sm:$0xff]
        %v1100 = vld [vmem:[#allocation10 + $0x8] sm:$0xff]
        %v1101 = vld [vmem:[#allocation10 + $0x10] sm:$0xff]
        %v1102 = vld [vmem:[#allocation10 + $0x18] sm:$0xff]
        %v1103 = vld [vmem:[#allocation10 + $0x20] sm:$0xff]
        %v1104 = vld [vmem:[#allocation10 + $0x28] sm:$0xff]
        %v1105 = vld [vmem:[#allocation10 + $0x30] sm:$0xff]
        %v1106 = vld [vmem:[#allocation10 + $0x38] sm:$0xff]
        %v1107 = vld [vmem:[#allocation10 + $0x40] sm:$0xff]
        %v1108 = vld [vmem:[#allocation10 + $0x48] sm:$0xff]
        %v1109 = vld [vmem:[#allocation10 + $0x50] sm:$0xff]
        %v1110 = vld [vmem:[#allocation10 + $0x58] sm:$0xff]
        %v1111 = vld [vmem:[#allocation10 + $0x60] sm:$0xff]
        %v1112 = vld [vmem:[#allocation10 + $0x68] sm:$0xff]
        %v1113 = vld [vmem:[#allocation10 + $0x70] sm:$0xff]
        %v1114 = vld [vmem:[#allocation10 + $0x78] sm:$0xff]
        %v1115 = vld [vmem:[#allocation10 + $0x80] sm:$0xff]
        %v1116 = vld [vmem:[#allocation10 + $0x88] sm:$0xff]
        %v1117 = vld [vmem:[#allocation10 + $0x90] sm:$0xff]
        %v1118 = vld [vmem:[#allocation10 + $0x98] sm:$0xff]
        %v1119 = vld [vmem:[#allocation10 + $0xa0] sm:$0xff]
        %v1120 = vld [vmem:[#allocation10 + $0xa8] sm:$0xff]
        %v1121 = vld [vmem:[#allocation10 + $0xb0] sm:$0xff]
        %v1122 = vld [vmem:[#allocation10 + $0xb8] sm:$0xff]
        %v1123 = vld [vmem:[#allocation10 + $0xc0] sm:$0xff]
        %v1124 = vld [vmem:[#allocation10 + $0xc8] sm:$0xff]
        %v1125 = vld [vmem:[#allocation10 + $0xd0] sm:$0xff]
        %v1126 = vld [vmem:[#allocation10 + $0xd8] sm:$0xff]
        %v1127 = vld [vmem:[#allocation10 + $0xe0] sm:$0xff]
        %v1128 = vld [vmem:[#allocation10 + $0xe8] sm:$0xff]
        %v1129 = vld [vmem:[#allocation10 + $0xf0] sm:$0xff]
        %v1130 = vld [vmem:[#allocation10 + $0xf8] sm:$0xff]
        %v1131 = vld [vmem:[#allocation10 + $0x100] sm:$0xff]
        %v1132 = vld [vmem:[#allocation10 + $0x108] sm:$0xff]
        %v1133 = vld [vmem:[#allocation10 + $0x110] sm:$0xff]
        %v1134 = vld [vmem:[#allocation10 + $0x118] sm:$0xff]
        %v1135 = vld [vmem:[#allocation10 + $0x120] sm:$0xff]
        %v1136 = vld [vmem:[#allocation10 + $0x128] sm:$0xff]
        %v1137 = vld [vmem:[#allocation10 + $0x130] sm:$0xff]
        %v1138 = vld [vmem:[#allocation10 + $0x138] sm:$0xff]
        %v1139 = vld [vmem:[#allocation10 + $0x140] sm:$0xff]
        %v1140 = vld [vmem:[#allocation10 + $0x148] sm:$0xff]
        %v1141 = vld [vmem:[#allocation10 + $0x150] sm:$0xff]
        %v1142 = vld [vmem:[#allocation10 + $0x158] sm:$0xff]
        %v1143 = vld [vmem:[#allocation10 + $0x160] sm:$0xff]
        %v1144 = vld [vmem:[#allocation10 + $0x168] sm:$0xff]
        %v1145 = vld [vmem:[#allocation10 + $0x170] sm:$0xff]
        %v1146 = vld [vmem:[#allocation10 + $0x178] sm:$0xff]
        %v1147 = vld [vmem:[%s6] sm:$0x1]
        %v1149 = vperm.slane %v1147, 0
        %1151 = vmatpush.msra.mxu0 %v1114
        %1152 = vmatpush.msra.mxu0 %v1113
        %1153 = vmatpush.msra.mxu0 %v1112
        %1154 = vmatpush.msra.mxu0 %v1111
        %1155 = vmatpush.msra.mxu0 %v1110
        %1156 = vmatpush.msra.mxu0 %v1109
        %1157 = vmatpush.msra.mxu0 %v1108
        %1158 = vmatpush.msra.mxu0 %v1107
        %1159 = vmatpush.msra.mxu0 %v1106
        %1160 = vmatpush.msra.mxu0 %v1105
        %1161 = vmatpush.msra.mxu0 %v1104
        %1162 = vmatpush.msra.mxu0 %v1103
        %1163 = vmatpush.msra.mxu0 %v1102
        %1164 = vmatpush.msra.mxu0 %v1101
        %1165 = vmatpush.msra.mxu0 %v1100
        %1166 = vmatpush.msra.mxu0 %v1099
        %1167 = vmatmul.f32.gmra.mxu0 %v1079
        %v1168 = vpop.f32.mrf.mxu0
        %v1169 = vadd.f32 %v1149, %v1168
        %1170 = vmatmul.f32.gmra.mxu0 %v1080
        %v1171 = vpop.f32.mrf.mxu0
        %v1172 = vadd.f32 %v1149, %v1171
        %1173 = vdwg.mxu0
        %1174 = vmatpush.msra.mxu0 %v1130
        %1175 = vmatpush.msra.mxu0 %v1129
        %1176 = vmatpush.msra.mxu0 %v1128
        %1177 = vmatpush.msra.mxu0 %v1127
        %1178 = vmatpush.msra.mxu0 %v1126
        %1179 = vmatpush.msra.mxu0 %v1125
        %1180 = vmatpush.msra.mxu0 %v1124
        %1181 = vmatpush.msra.mxu0 %v1123
        %1182 = vmatpush.msra.mxu0 %v1122
        %1183 = vmatpush.msra.mxu0 %v1121
        %1184 = vmatpush.msra.mxu0 %v1120
        %1185 = vmatpush.msra.mxu0 %v1119
        %1186 = vmatpush.msra.mxu0 %v1118
        %1187 = vmatpush.msra.mxu0 %v1117
        %1188 = vmatpush.msra.mxu0 %v1116
        %1189 = vmatpush.msra.mxu0 %v1115
        %1190 = vmatmul.f32.gmra.mxu0 %v1087
        %v1191 = vpop.f32.mrf.mxu0
        %v1192 = vadd.f32 %v1169, %v1191
        %1193 = vmatmul.f32.gmra.mxu0 %v1089
        %v1194 = vpop.f32.mrf.mxu0
        %v1195 = vadd.f32 %v1172, %v1194
        %1196 = vdwg.mxu0
        %1197 = vmatpush.msra.mxu0 %v1146
        %1198 = vmatpush.msra.mxu0 %v1145
        %1199 = vmatpush.msra.mxu0 %v1144
        %1200 = vmatpush.msra.mxu0 %v1143
        %1201 = vmatpush.msra.mxu0 %v1142
        %1202 = vmatpush.msra.mxu0 %v1141
        %1203 = vmatpush.msra.mxu0 %v1140
        %1204 = vmatpush.msra.mxu0 %v1139
        %1205 = vmatpush.msra.mxu0 %v1138
        %1206 = vmatpush.msra.mxu0 %v1137
        %1207 = vmatpush.msra.mxu0 %v1136
        %1208 = vmatpush.msra.mxu0 %v1135
        %1209 = vmatpush.msra.mxu0 %v1134
        %1210 = vmatpush.msra.mxu0 %v1133
        %1211 = vmatpush.msra.mxu0 %v1132
        %1212 = vmatpush.msra.mxu0 %v1131
        %1213 = vmatmul.f32.gmra.mxu0 %v1094
        %v1214 = vpop.f32.mrf.mxu0
        %v1215 = vadd.f32 %v1192, %v1214
        %1216 = vmatmul.f32.gmra.mxu0 %v1096
        %v1217 = vpop.f32.mrf.mxu0
        %v1218 = vadd.f32 %v1195, %v1217
        %1219 = vdwg.mxu0
        %v1220 = vld [vmem:[#allocation11] sm:$0xff]
        %v1221 = vld [vmem:[#allocation11 + $0x8] sm:$0xff]
        %v1222 = vld [vmem:[#allocation11 + $0x10] sm:$0xff]
        %v1223 = vld [vmem:[#allocation11 + $0x18] sm:$0xff]
        %v1224 = vld [vmem:[#allocation11 + $0x20] sm:$0xff]
        %v1225 = vld [vmem:[#allocation11 + $0x28] sm:$0xff]
        %v1226 = vld [vmem:[#allocation11 + $0x30] sm:$0xff]
        %v1227 = vld [vmem:[#allocation11 + $0x38] sm:$0xff]
        %v1228 = vld [vmem:[#allocation11 + $0x40] sm:$0xff]
        %v1229 = vld [vmem:[#allocation11 + $0x48] sm:$0xff]
        %v1230 = vld [vmem:[#allocation11 + $0x50] sm:$0xff]
        %v1231 = vld [vmem:[#allocation11 + $0x58] sm:$0xff]
        %v1232 = vld [vmem:[#allocation11 + $0x60] sm:$0xff]
        %v1233 = vld [vmem:[#allocation11 + $0x68] sm:$0xff]
        %v1234 = vld [vmem:[#allocation11 + $0x70] sm:$0xff]
        %v1235 = vld [vmem:[#allocation11 + $0x78] sm:$0xff]
        %v1236 = vld [vmem:[%s8] sm:$0x1]
        %v1238 = vperm.slane %v1236, 0
        %1240 = vmatpush.msra.mxu0 %v1235
        %1241 = vmatpush.msra.mxu0 %v1234
        %1242 = vmatpush.msra.mxu0 %v1233
        %1243 = vmatpush.msra.mxu0 %v1232
        %1244 = vmatpush.msra.mxu0 %v1231
        %1245 = vmatpush.msra.mxu0 %v1230
        %1246 = vmatpush.msra.mxu0 %v1229
        %1247 = vmatpush.msra.mxu0 %v1228
        %1248 = vmatpush.msra.mxu0 %v1227
        %1249 = vmatpush.msra.mxu0 %v1226
        %1250 = vmatpush.msra.mxu0 %v1225
        %1251 = vmatpush.msra.mxu0 %v1224
        %1252 = vmatpush.msra.mxu0 %v1223
        %1253 = vmatpush.msra.mxu0 %v1222
        %1254 = vmatpush.msra.mxu0 %v1221
        %1255 = vmatpush.msra.mxu0 %v1220
        %1256 = vmatmul.f32.gmra.mxu0 %v575
        %v1257 = vpop.f32.mrf.mxu0
        %v1258 = vadd.f32 %v1238, %v1257
        %1259 = vmatmul.f32.gmra.mxu0 %v576
        %v1260 = vpop.f32.mrf.mxu0
        %v1261 = vadd.f32 %v1238, %v1260
        %1262 = vdwg.mxu0
        %v1263 = vadd.f32 %v1215, %v1258
        %v1264 = vadd.f32 %v1218, %v1261
        %1265 = vst [vmem:[%s527] sm:$0xff] %v1263
        %1266 = vst [vmem:[%s527 + $0x8] sm:$0xff] %v1264
        %s1267 = sand.u32 %s279, 1
        %s1268 = scalar_lea.sflag [#allocation4], %s1267
        %s1269 = sand.u32 %s279, 1
        %s1270 = smul.addr %s1269, 16
        %s1271 = scalar_lea.vmem [#allocation13], %s1270
        // Predicated region
        $region81: #{tpu_custom_call.1} parent=55 // pred_check
          %p1272 = pneg %p289
        $region82: #{tpu_custom_call.1} parent=55 // pred_check_branch
          %1274 = sbr.rel (%p1272) target = $region84
        $region83: #{tpu_custom_call.1} parent=55 // pred_region
          %s1275 = smul.u32 2, %s36
          %1277 = vsyncadd %s1268, 0
          %s1278 = smul.addr %s35, 8
          %s1279 = sadd.s32 %s1275, %s1278
          %s1280 = smul.addr %s1279, 8
          %s1281 = scalar_lea.hbm %s9, %s1280
          %s1282 = sshll.u32 %s1271, 4
          %s1283 = int_to_ptr.vmem [resolvable:$true] %s1282
          %s1284 = sshll.u32 %s1281, 4
          %s1285 = int_to_ptr.hbm [resolvable:$true] %s1284
          %1290 = dma.vmem_to_hbm [thread:$0]  %s1283, 256, %s1285, %s1268, 128, 128, 8
        $region84: #{tpu_custom_call.1} parent=55 // pred_fallthru
          _
      $region56: #{tpu_custom_call.1} parent=5 // pred_fallthru
        _
      %p1291 = scmp.le.s32.totalorder 2, %s26
      // Predicated region
      $region85: #{tpu_custom_call.1} parent=5 // pred_check
        %p1292 = pneg %p1291
      $region86: #{tpu_custom_call.1} parent=5 // pred_check_branch
        %1294 = sbr.rel (%p1292) target = $region88
      $region87: #{tpu_custom_call.1} parent=5 // pred_region
        %s1295 = ssub.s32 %s26, 2
        // Predicated region
        $region89: #{tpu_custom_call.1} parent=87 // pred_check
          %p1296 = pneg %p295
        $region90: #{tpu_custom_call.1} parent=87 // pred_check_branch
          %1298 = sbr.rel (%p1296) target = $region92
        $region91: #{tpu_custom_call.1} parent=87 // pred_region
          %s1299 = sand.u32 %s280, 1
          %s1300 = scalar_lea.sflag [#allocation4], %s1299
          %s1301 = sand.u32 %s280, 1
          %s1302 = smul.addr %s1301, 16
          %s1303 = scalar_lea.vmem [#allocation13], %s1302
          %1305 = dma.done %s1300, 256
        $region92: #{tpu_custom_call.1} parent=87 // pred_fallthru
          _
      $region88: #{tpu_custom_call.1} parent=5 // pred_fallthru
        _
    $region6: #{tpu_custom_call.1} parent=1 // loop_footer
      %s30 = sadd.s32 1, %s26
    $region7: #{tpu_custom_call.1} parent=1 // loop_footer_branch
      %25 = sbr.rel target = $region3
    $region8: #{tpu_custom_call.1} parent=1 // loop_exit
      _
    %1306 = vsyncpa [#allocation3], 1
    %s1307 = scalar_lea.sflag [#allocation3], 1
    %1308 = vsyncpa %s1307, 1
    %1309 = vsyncpa [#allocation6], 1
    %s1310 = scalar_lea.sflag [#allocation6], 1
    %1311 = vsyncpa %s1310, 1
    %1312 = vsyncpa [#allocation9], 1
    %1313 = vsyncpa [#allocation12], 1
    %1314 = vsyncpa [#allocation4], 1
    %s1315 = scalar_lea.sflag [#allocation4], 1
    %1316 = vsyncpa %s1315, 1

</llo_original>
